<compile_context>
chip_gen: v6e
topology: v6e:2x2x1
jax: 0.10.0
libtpu: 0.0.40
codegen_flags: <defaults>
</compile_context>

<pallas_src>
import functools

import jax
import jax.numpy as jnp
import numpy as np
from jax.experimental import pallas as pl
from jax.experimental.pallas import tpu as pltpu


# ---------------- Pallas kernel: EEM (edge enhance module) -------------------
def _eem_kernel(xe_ref, mask_ref, wc_ref, we_ref, wp_ref, a1_ref, neg_ref, o_ref,
                *, C2, Lseg, P, offs, bblk):
    f32 = jnp.float32
    bf16 = jnp.bfloat16

    wc = wc_ref[...]          # (2*C2, 18) bf16 : fused 1x1 + depthwise-3x3 weight
    we = we_ref[...]          # (C2, 9)    f32  : ehead 3x3 taps
    wp = wp_ref[...]          # (2, C2)    f32  : project_out 1x1 weight
    a1 = a1_ref[...]          # (C2, 1)    f32  : per-row (= per-head) attn scale
    neg = neg_ref[...]        # (C2, C2)   f32  : 0 on head blocks, -1e30 elsewhere
    mask = mask_ref[...]      # (1, Lseg)  f32  : 1 at real-pixel positions

    def one_image(xe):
        # xe: (3, Ltot) f32 rows = [x_re, x_im, e], zero-padded + over-padded.
        xb = xe[0:2, :].astype(bf16)           # only MXU operands go bf16
        ev = xe[2:3, :]                        # f32

        # 3x3 taps are static contiguous slices of the over-padded row: no rolls,
        # no per-tap boundary masks (the padding supplies real zeros).
        xstk = jnp.concatenate([xb[:, P + o: P + o + Lseg] for o in offs], axis=0)  # (18,L) bf16
        estk = jnp.concatenate([ev[:, P + o: P + o + Lseg] for o in offs], axis=0)  # (9, L) f32

        # fused 1x1 conv + depthwise 3x3  ==  one matmul with the combined weight
        q_dw = jnp.dot(wc, xstk, preferred_element_type=f32)      # (2*C2, L)
        k_eg = jnp.dot(we, estk, preferred_element_type=f32)      # (C2, L)

        q_im = q_dw[:C2, :]                    # chunk(2, dim=channel)
        v_im = q_dw[C2:, :]

        # L2-normalize over the *interior* positions only (pad rows / border
        # cols of the padded layout hold garbage conv values).
        qss = jnp.sum(q_im * q_im * mask, axis=-1, keepdims=True)
        qn = q_im * jax.lax.rsqrt(jnp.maximum(qss, 1e-24))
        k_m = k_eg * mask                      # masked k serves both norm & Gram
        kss = jnp.sum(k_m * k_m, axis=-1, keepdims=True)
        kn = k_m * jax.lax.rsqrt(jnp.maximum(kss, 1e-24))

        # all heads' q.k^T at once (single K=L contraction, f32 for parity)
        gram = jax.lax.dot_general(qn, kn, (((1,), (1,)), ((), ())),
                                   preferred_element_type=f32)    # (C2, C2)

        # fused per-head softmax: off-block-diagonal entries -> -1e30 -> exp 0,
        # so one row softmax == per-head softmax and the zero blocks make
        # wp @ attn exactly the per-head folded projection weight.
        logits = gram * a1 + neg
        logits = logits - jnp.max(logits, axis=-1, keepdims=True)
        pexp = jnp.exp(logits)
        attn = pexp / jnp.sum(pexp, axis=-1, keepdims=True)       # (C2, C2)
        w_eff = jnp.dot(wp, attn, preferred_element_type=f32)     # (2, C2)
        proj = jnp.dot(w_eff, v_im, preferred_element_type=f32)   # (2, L)

        x_c = xe[0:2, P:P + Lseg]                                 # residual input
        return (x_c + proj).astype(o_ref.dtype)

    if bblk == 1:
        o_ref[0] = one_image(xe_ref[0])
    else:
        def body(b, carry):
            o_ref[b] = one_image(xe_ref[b])
            return carry
        jax.lax.fori_loop(0, bblk, body, 0)


def _vmem_limit_bytes(Lseg, Ltot, bblk):
    # Generous in-kernel footprint estimate (sublane-padded), clamped below the
    # physical per-core VMEM so the BlockSpec double buffers keep headroom.
    stacks = (32 * 2 + 16 * 4) * Lseg                       # xstk bf16 + estk f32 (row-padded)
    f32_inter = (16 + 8 * 4 + 3 * 2 + 8) * 4 * Lseg         # q_dw, k/km/kn/qsq, proj/x_c, slop
    io = 2 * 4 * bblk * (8 * Ltot + 8 * Lseg)               # double-buffered padded in/out tiles
    needed = stacks + f32_inter + io + (4 << 20)
    try:
        cap = int(pltpu.get_tpu_info().vmem_capacity_bytes)
    except Exception:
        cap = 64 << 20                                      # conservative: v7x per-TC VMEM
    return int(max(32 << 20, min(needed, cap - (12 << 20))))


def eem_pallas(x, e, params, *, num_heads, batch_block=1):
    """x: (B, 2, H, W) float32, e: (B, 1, H, W) float32 -> (B, 2, H, W)."""
    B, Cx, H, W = x.shape
    assert Cx == 2
    C2 = params["we"].shape[0]
    assert C2 % num_heads == 0
    assert B % batch_block == 0
    ch = C2 // num_heads

    Wp, Hp = W + 2, H + 2
    Lseg = Hp * Wp
    P = Wp + 1
    Ltot = Lseg + 2 * P
    offs = tuple(dy * Wp + dx for dy in (-1, 0, 1) for dx in (-1, 0, 1))

    # ---- zero-padded, flattened, over-padded layout (built once in XLA) ----
    xp = jnp.pad(x.astype(jnp.float32), ((0, 0), (0, 0), (1, 1), (1, 1)))    # (B,2,Hp,Wp)
    ep = jnp.pad(e.astype(jnp.float32), ((0, 0), (0, 0), (1, 1), (1, 1)))    # (B,1,Hp,Wp)
    xe = jnp.concatenate([xp, ep], axis=1).reshape(B, 3, Lseg)               # (B,3,Lseg)
    xe = jnp.pad(xe, ((0, 0), (0, 0), (P, P)))                               # (B,3,Ltot)

    # interior-position mask over the padded flat layout
    pos = np.arange(Lseg)
    rr, cc = pos // Wp, pos % Wp
    interior = ((rr >= 1) & (rr <= H) & (cc >= 1) & (cc <= W))
    mask = jnp.asarray(interior.reshape(1, Lseg), dtype=jnp.float32)         # (1, Lseg)

    # ---- weights (pre-cast / pre-combined in the wrapper) ----
    w1 = params["w1"].astype(jnp.float32)                                    # (2*C2, 2)
    w2 = params["w2"].astype(jnp.float32)                                    # (2*C2, 9)
    # Wc[c, 2*tap + j] = w2[c, tap] * w1[c, j]   (fuses conv1x1 into the dwconv)
    wc = (w2[:, :, None] * w1[:, None, :]).reshape(2 * C2, 18).astype(jnp.bfloat16)
    we = params["we"].astype(jnp.float32)                                    # (C2, 9)
    wp = params["wp"].astype(jnp.float32)                                    # (2, C2)
    a1f = jnp.repeat(params["a1"].reshape(num_heads).astype(jnp.float32), ch
                     ).reshape(C2, 1)                                        # (C2, 1)
    hid = np.arange(C2) // ch
    neg = jnp.asarray(np.where(hid[:, None] == hid[None, :], 0.0, -1e30),
                      dtype=jnp.float32)                                     # (C2, C2)

    kern = functools.partial(_eem_kernel, C2=C2, Lseg=Lseg, P=P, offs=offs,
                             bblk=batch_block)
    const2d = lambda i: (0, 0)

    out = pl.pallas_call(
        kern,
        out_shape=jax.ShapeDtypeStruct((B, 2, Lseg), jnp.float32),
        grid=(B // batch_block,),
        in_specs=[
            pl.BlockSpec((batch_block, 3, Ltot), lambda i: (i, 0, 0)),   # x + e packed
            pl.BlockSpec((1, Lseg), const2d),                            # interior mask
            pl.BlockSpec(wc.shape, const2d),
            pl.BlockSpec(we.shape, const2d),
            pl.BlockSpec(wp.shape, const2d),
            pl.BlockSpec(a1f.shape, const2d),
            pl.BlockSpec(neg.shape, const2d),
        ],
        out_specs=pl.BlockSpec((batch_block, 2, Lseg), lambda i: (i, 0, 0)),
        compiler_params=pltpu.CompilerParams(
            dimension_semantics=("parallel",),
            vmem_limit_bytes=_vmem_limit_bytes(Lseg, Ltot, batch_block)),
    )(xe, mask, wc, we, wp, a1f, neg)

    # drop the zero-padding border (kernel output is in the padded layout)
    return out.reshape(B, 2, Hp, Wp)[:, :, 1:H + 1, 1:W + 1]


# ---------------- DC_multicoil (data consistency), plain JAX ------------------
# TODO(synk): DC_multicoil source was not provided with the module; implemented as
# standard hard multicoil data consistency (SENSE expand -> FFT -> replace sampled
# k-space -> IFFT -> conj-coil combine).  FFT has no Pallas equivalent.
def _fft2c(x, shift):
    axes = (-2, -1)
    if shift:
        x = jnp.fft.ifftshift(x, axes=axes)
    k = jnp.fft.fft2(x, axes=axes, norm="ortho")
    if shift:
        k = jnp.fft.fftshift(k, axes=axes)
    return k


def _ifft2c(k, shift):
    axes = (-2, -1)
    if shift:
        k = jnp.fft.ifftshift(k, axes=axes)
    x = jnp.fft.ifft2(k, axes=axes, norm="ortho")
    if shift:
        x = jnp.fft.fftshift(x, axes=axes)
    return x


def dc_multicoil(x, y, m, sens_map, shift=False):
    """x: (B,2,H,W) real/imag image; y: (B,nc,H,W) c64 k-space; m: (B,1,H,W) mask;
    sens_map: (B,nc,H,W) c64 coil sensitivities."""
    xc = x[:, 0] + 1j * x[:, 1]                       # (B, H, W)
    coil = xc[:, None, :, :] * sens_map               # (B, nc, H, W)
    k = _fft2c(coil, shift)
    k_dc = k * (1.0 - m) + y * m
    img = _ifft2c(k_dc, shift)
    comb = jnp.sum(img * jnp.conj(sens_map), axis=1)  # (B, H, W)
    return jnp.stack([comb.real, comb.imag], axis=1).astype(x.dtype)


def eam_forward(x, e, y, m, sens_map, params, *, num_heads, shift=False,
                batch_block=1):
    xout = eem_pallas(x, e, params, num_heads=num_heads, batch_block=batch_block)
    return dc_multicoil(xout, y, m, sens_map, shift=shift)


# ---------------- pure-JAX reference for the EEM part (no Pallas) -------------
def eem_reference(x, e, params, *, num_heads):
    B, _, H, W = x.shape
    C2 = params["we"].shape[0]
    w1 = params["w1"].reshape(2 * C2, 2, 1, 1)
    w2 = params["w2"].reshape(2 * C2, 1, 3, 3)
    we = params["we"].reshape(C2, 1, 3, 3)
    wp = params["wp"].reshape(2, C2, 1, 1)
    dn = ("NCHW", "OIHW", "NCHW")
    q1 = jax.lax.conv_general_dilated(x, w1, (1, 1), "VALID", dimension_numbers=dn)
    q1 = jax.lax.conv_general_dilated(q1, w2, (1, 1), "SAME",
                                      feature_group_count=2 * C2, dimension_numbers=dn)
    k_eg = jax.lax.conv_general_dilated(e, we, (1, 1), "SAME", dimension_numbers=dn)
    q_im, v_im = q1[:, :C2], q1[:, C2:]
    heads = lambda t: t.reshape(B, num_heads, C2 // num_heads, H * W)
    q_im, k_eg, v_im = heads(q_im), heads(k_eg), heads(v_im)
    l2n = lambda t: t / jnp.maximum(jnp.linalg.norm(t, axis=-1, keepdims=True), 1e-12)
    q_im, k_eg = l2n(q_im), l2n(k_eg)
    attn = jnp.einsum("bhcn,bhdn->bhcd", q_im, k_eg) * params["a1"][None, :, None, None]
    attn = jax.nn.softmax(attn, axis=-1)
    out = jnp.einsum("bhcd,bhdn->bhcn", attn, v_im).reshape(B, C2, H, W)
    return x + jax.lax.conv_general_dilated(out, wp, (1, 1), "VALID", dimension_numbers=dn)


if __name__ == "__main__":
    B, H, W = 2, 16, 16
    C2, num_heads = 8, 2          # EEM(C, C1, C2=8, num_heads=2, bias=False)
    ncoil = 4

    key = jax.random.PRNGKey(0)
    ks = jax.random.split(key, 12)
    params = {
        "w1": 0.1 * jax.random.normal(ks[0], (2 * C2, 2), jnp.float32),   # conv1 (2*C2,2,1,1)
        "w2": 0.1 * jax.random.normal(ks[1], (2 * C2, 9), jnp.float32),   # dconv (2*C2,1,3,3)
        "we": 0.1 * jax.random.normal(ks[2], (C2, 9), jnp.float32),       # ehead (C2,1,3,3)
        "wp": 0.1 * jax.random.normal(ks[3], (2, C2), jnp.float32),       # project_out (2,C2,1,1)
        "a1": jnp.ones((num_heads,), jnp.float32),                        # torch.ones(heads,1,1)
    }

    x = jax.random.normal(ks[4], (B, 2, H, W), jnp.float32)
    e = jax.random.normal(ks[5], (B, 1, H, W), jnp.float32)
    sens = (jax.random.normal(ks[6], (B, ncoil, H, W), jnp.float32)
            + 1j * jax.random.normal(ks[7], (B, ncoil, H, W), jnp.float32)).astype(jnp.complex64)
    sens = sens / jnp.sqrt(jnp.sum(jnp.abs(sens) ** 2, axis=1, keepdims=True) + 1e-8)
    y = (jax.random.normal(ks[8], (B, ncoil, H, W), jnp.float32)
         + 1j * jax.random.normal(ks[9], (B, ncoil, H, W), jnp.float32)).astype(jnp.complex64)
    m = (jax.random.uniform(ks[10], (1, 1, 1, W)) < 0.4).astype(jnp.float32)
    m = jnp.broadcast_to(m, (B, 1, H, W))            # column-sampling mask

    out = eam_forward(x, e, y, m, sens, params, num_heads=num_heads, shift=False,
                      batch_block=1)
    out = jax.block_until_ready(out)

    ref = dc_multicoil(eem_reference(x, e, params, num_heads=num_heads), y, m, sens, shift=False)
    np.testing.assert_allclose(np.asarray(out), np.asarray(ref), rtol=5e-2, atol=2e-2)
    print("KERNEL_OK")
</pallas_src>

<mosaic_0001>
module attributes {stable_mosaic.version = 11 : i64} {
  func.func @_eem_kernel(%arg0: i32, %arg1: memref<1x3x362xf32, #tpu.memory_space<vmem>>, %arg2: memref<1x324xf32, #tpu.memory_space<vmem>>, %arg3: memref<16x18xbf16, #tpu.memory_space<vmem>>, %arg4: memref<8x9xf32, #tpu.memory_space<vmem>>, %arg5: memref<2x8xf32, #tpu.memory_space<vmem>>, %arg6: memref<8x1xf32, #tpu.memory_space<vmem>>, %arg7: memref<8x8xf32, #tpu.memory_space<vmem>>, %arg8: memref<1x2x324xf32, #tpu.memory_space<vmem>>) attributes {dimension_semantics = [#tpu.dimension_semantics<parallel>], iteration_bounds = array<i64: 2>, scalar_prefetch = 0 : i64, scratch_operands = 0 : i64, tpu.core_type = #tpu.core_type<tc>, window_params = [{transform_indices = @transform_0, window_bounds = array<i64: 1, 3, 362>}, {pipeline_mode = #tpu.pipeline_mode<synchronous>, transform_indices = @transform_1, window_bounds = array<i64: 1, 324>}, {pipeline_mode = #tpu.pipeline_mode<synchronous>, transform_indices = @transform_2, window_bounds = array<i64: 16, 18>}, {pipeline_mode = #tpu.pipeline_mode<synchronous>, transform_indices = @transform_3, window_bounds = array<i64: 8, 9>}, {pipeline_mode = #tpu.pipeline_mode<synchronous>, transform_indices = @transform_4, window_bounds = array<i64: 2, 8>}, {pipeline_mode = #tpu.pipeline_mode<synchronous>, transform_indices = @transform_5, window_bounds = array<i64: 8, 1>}, {pipeline_mode = #tpu.pipeline_mode<synchronous>, transform_indices = @transform_6, window_bounds = array<i64: 8, 8>}, {transform_indices = @transform_7, window_bounds = array<i64: 1, 2, 324>}]} {
    %c0 = arith.constant 0 : index
    %c0_0 = arith.constant 0 : index
    %0 = vector.load %arg3[%c0, %c0_0] : memref<16x18xbf16, #tpu.memory_space<vmem>>, vector<16x18xbf16>
    %c0_1 = arith.constant 0 : index
    %c0_2 = arith.constant 0 : index
    %1 = vector.load %arg4[%c0_1, %c0_2] : memref<8x9xf32, #tpu.memory_space<vmem>>, vector<8x9xf32>
    %c0_3 = arith.constant 0 : index
    %c0_4 = arith.constant 0 : index
    %2 = vector.load %arg5[%c0_3, %c0_4] : memref<2x8xf32, #tpu.memory_space<vmem>>, vector<2x8xf32>
    %c0_5 = arith.constant 0 : index
    %c0_6 = arith.constant 0 : index
    %3 = vector.load %arg6[%c0_5, %c0_6] : memref<8x1xf32, #tpu.memory_space<vmem>>, vector<8x1xf32>
    %c0_7 = arith.constant 0 : index
    %c0_8 = arith.constant 0 : index
    %4 = vector.load %arg7[%c0_7, %c0_8] : memref<8x8xf32, #tpu.memory_space<vmem>>, vector<8x8xf32>
    %c0_9 = arith.constant 0 : index
    %c0_10 = arith.constant 0 : index
    %5 = vector.load %arg2[%c0_9, %c0_10] : memref<1x324xf32, #tpu.memory_space<vmem>>, vector<1x324xf32>
    %c0_11 = arith.constant 0 : index
    %c0_12 = arith.constant 0 : index
    %c0_13 = arith.constant 0 : index
    %6 = vector.load %arg1[%c0_11, %c0_12, %c0_13] : memref<1x3x362xf32, #tpu.memory_space<vmem>>, vector<1x3x362xf32>
    %7 = vector.shape_cast %6 : vector<1x3x362xf32> to vector<3x362xf32>
    %8 = vector.extract_strided_slice %7 {offsets = [0, 0], sizes = [2, 362], strides = [1, 1]} : vector<3x362xf32> to vector<2x362xf32>
    %9 = arith.truncf %8 : vector<2x362xf32> to vector<2x362xbf16>
    %10 = vector.extract_strided_slice %7 {offsets = [2, 0], sizes = [1, 362], strides = [1, 1]} : vector<3x362xf32> to vector<1x362xf32>
    %11 = vector.extract_strided_slice %9 {offsets = [0, 0], sizes = [2, 324], strides = [1, 1]} : vector<2x362xbf16> to vector<2x324xbf16>
    %12 = vector.extract_strided_slice %9 {offsets = [0, 1], sizes = [2, 324], strides = [1, 1]} : vector<2x362xbf16> to vector<2x324xbf16>
    %13 = vector.extract_strided_slice %9 {offsets = [0, 2], sizes = [2, 324], strides = [1, 1]} : vector<2x362xbf16> to vector<2x324xbf16>
    %14 = vector.extract_strided_slice %9 {offsets = [0, 18], sizes = [2, 324], strides = [1, 1]} : vector<2x362xbf16> to vector<2x324xbf16>
    %15 = vector.extract_strided_slice %9 {offsets = [0, 19], sizes = [2, 324], strides = [1, 1]} : vector<2x362xbf16> to vector<2x324xbf16>
    %16 = vector.extract_strided_slice %9 {offsets = [0, 20], sizes = [2, 324], strides = [1, 1]} : vector<2x362xbf16> to vector<2x324xbf16>
    %17 = vector.extract_strided_slice %9 {offsets = [0, 36], sizes = [2, 324], strides = [1, 1]} : vector<2x362xbf16> to vector<2x324xbf16>
    %18 = vector.extract_strided_slice %9 {offsets = [0, 37], sizes = [2, 324], strides = [1, 1]} : vector<2x362xbf16> to vector<2x324xbf16>
    %19 = vector.extract_strided_slice %9 {offsets = [0, 38], sizes = [2, 324], strides = [1, 1]} : vector<2x362xbf16> to vector<2x324xbf16>
    %20 = tpu.concatenate %11, %12, %13, %14, %15, %16, %17, %18, %19 in 0 : vector<2x324xbf16>, vector<2x324xbf16>, vector<2x324xbf16>, vector<2x324xbf16>, vector<2x324xbf16>, vector<2x324xbf16>, vector<2x324xbf16>, vector<2x324xbf16>, vector<2x324xbf16> -> vector<18x324xbf16>
    %21 = vector.extract_strided_slice %10 {offsets = [0, 0], sizes = [1, 324], strides = [1, 1]} : vector<1x362xf32> to vector<1x324xf32>
    %22 = vector.extract_strided_slice %10 {offsets = [0, 1], sizes = [1, 324], strides = [1, 1]} : vector<1x362xf32> to vector<1x324xf32>
    %23 = vector.extract_strided_slice %10 {offsets = [0, 2], sizes = [1, 324], strides = [1, 1]} : vector<1x362xf32> to vector<1x324xf32>
    %24 = vector.extract_strided_slice %10 {offsets = [0, 18], sizes = [1, 324], strides = [1, 1]} : vector<1x362xf32> to vector<1x324xf32>
    %25 = vector.extract_strided_slice %10 {offsets = [0, 19], sizes = [1, 324], strides = [1, 1]} : vector<1x362xf32> to vector<1x324xf32>
    %26 = vector.extract_strided_slice %10 {offsets = [0, 20], sizes = [1, 324], strides = [1, 1]} : vector<1x362xf32> to vector<1x324xf32>
    %27 = vector.extract_strided_slice %10 {offsets = [0, 36], sizes = [1, 324], strides = [1, 1]} : vector<1x362xf32> to vector<1x324xf32>
    %28 = vector.extract_strided_slice %10 {offsets = [0, 37], sizes = [1, 324], strides = [1, 1]} : vector<1x362xf32> to vector<1x324xf32>
    %29 = vector.extract_strided_slice %10 {offsets = [0, 38], sizes = [1, 324], strides = [1, 1]} : vector<1x362xf32> to vector<1x324xf32>
    %30 = tpu.concatenate %21, %22, %23, %24, %25, %26, %27, %28, %29 in 0 : vector<1x324xf32>, vector<1x324xf32>, vector<1x324xf32>, vector<1x324xf32>, vector<1x324xf32>, vector<1x324xf32>, vector<1x324xf32>, vector<1x324xf32>, vector<1x324xf32> -> vector<9x324xf32>
    %cst = arith.constant dense<0.000000e+00> : vector<16x324xf32>
    %31 = tpu.matmul %0, %20, %cst {dimension_numbers = #tpu.dot_dimension_numbers<[1], [0], [0], [1], [0, 0, 1, 1], [], []>} : vector<16x18xbf16>, vector<18x324xbf16>, vector<16x324xf32> -> vector<16x324xf32>
    %cst_14 = arith.constant dense<0.000000e+00> : vector<8x324xf32>
    %32 = tpu.matmul %1, %30, %cst_14 {dimension_numbers = #tpu.dot_dimension_numbers<[1], [0], [0], [1], [0, 0, 1, 1], [], []>} : vector<8x9xf32>, vector<9x324xf32>, vector<8x324xf32> -> vector<8x324xf32>
    %33 = vector.extract_strided_slice %31 {offsets = [0, 0], sizes = [8, 324], strides = [1, 1]} : vector<16x324xf32> to vector<8x324xf32>
    %34 = vector.extract_strided_slice %31 {offsets = [8, 0], sizes = [8, 324], strides = [1, 1]} : vector<16x324xf32> to vector<8x324xf32>
    %35 = arith.mulf %33, %33 : vector<8x324xf32>
    %36 = vector.broadcast %5 : vector<1x324xf32> to vector<8x324xf32>
    %37 = arith.mulf %35, %36 : vector<8x324xf32>
    %cst_15 = arith.constant dense<0.000000e+00> : vector<8xf32>
    %38 = vector.multi_reduction <add>, %37, %cst_15 [1] : vector<8x324xf32> to vector<8xf32>
    %39 = vector.shape_cast %38 : vector<8xf32> to vector<8x1xf32>
    %cst_16 = arith.constant 1.000000e-24 : f32
    %40 = vector.broadcast %cst_16 : f32 to vector<8x1xf32>
    %41 = arith.maximumf %39, %40 : vector<8x1xf32>
    %42 = math.rsqrt %41 : vector<8x1xf32>
    %43 = vector.broadcast %42 : vector<8x1xf32> to vector<8x324xf32>
    %44 = arith.mulf %33, %43 : vector<8x324xf32>
    %45 = vector.broadcast %5 : vector<1x324xf32> to vector<8x324xf32>
    %46 = arith.mulf %32, %45 : vector<8x324xf32>
    %47 = arith.mulf %46, %46 : vector<8x324xf32>
    %cst_17 = arith.constant dense<0.000000e+00> : vector<8xf32>
    %48 = vector.multi_reduction <add>, %47, %cst_17 [1] : vector<8x324xf32> to vector<8xf32>
    %49 = vector.shape_cast %48 : vector<8xf32> to vector<8x1xf32>
    %cst_18 = arith.constant 1.000000e-24 : f32
    %50 = vector.broadcast %cst_18 : f32 to vector<8x1xf32>
    %51 = arith.maximumf %49, %50 : vector<8x1xf32>
    %52 = math.rsqrt %51 : vector<8x1xf32>
    %53 = vector.broadcast %52 : vector<8x1xf32> to vector<8x324xf32>
    %54 = arith.mulf %46, %53 : vector<8x324xf32>
    %cst_19 = arith.constant dense<0.000000e+00> : vector<8x8xf32>
    %55 = tpu.matmul %44, %54, %cst_19 {dimension_numbers = #tpu.dot_dimension_numbers<[1], [1], [0], [0], [0, 0, 1, 0], [], []>} : vector<8x324xf32>, vector<8x324xf32>, vector<8x8xf32> -> vector<8x8xf32>
    %56 = vector.broadcast %3 : vector<8x1xf32> to vector<8x8xf32>
    %57 = arith.mulf %55, %56 : vector<8x8xf32>
    %58 = arith.addf %57, %4 : vector<8x8xf32>
    %cst_20 = arith.constant dense<0xFF800000> : vector<8xf32>
    %59 = vector.multi_reduction <maximumf>, %58, %cst_20 [1] : vector<8x8xf32> to vector<8xf32>
    %60 = vector.shape_cast %59 : vector<8xf32> to vector<8x1xf32>
    %61 = vector.broadcast %60 : vector<8x1xf32> to vector<8x8xf32>
    %62 = arith.subf %58, %61 : vector<8x8xf32>
    %63 = math.exp %62 : vector<8x8xf32>
    %cst_21 = arith.constant dense<0.000000e+00> : vector<8xf32>
    %64 = vector.multi_reduction <add>, %63, %cst_21 [1] : vector<8x8xf32> to vector<8xf32>
    %65 = vector.shape_cast %64 : vector<8xf32> to vector<8x1xf32>
    %66 = vector.broadcast %65 : vector<8x1xf32> to vector<8x8xf32>
    %67 = arith.divf %63, %66 : vector<8x8xf32>
    %cst_22 = arith.constant dense<0.000000e+00> : vector<2x8xf32>
    %68 = tpu.matmul %2, %67, %cst_22 {dimension_numbers = #tpu.dot_dimension_numbers<[1], [0], [0], [1], [0, 0, 1, 1], [], []>} : vector<2x8xf32>, vector<8x8xf32>, vector<2x8xf32> -> vector<2x8xf32>
    %cst_23 = arith.constant dense<0.000000e+00> : vector<2x324xf32>
    %69 = tpu.matmul %68, %34, %cst_23 {dimension_numbers = #tpu.dot_dimension_numbers<[1], [0], [0], [1], [0, 0, 1, 1], [], []>} : vector<2x8xf32>, vector<8x324xf32>, vector<2x324xf32> -> vector<2x324xf32>
    %70 = vector.extract_strided_slice %7 {offsets = [0, 19], sizes = [2, 324], strides = [1, 1]} : vector<3x362xf32> to vector<2x324xf32>
    %71 = arith.addf %70, %69 : vector<2x324xf32>
    %c0_24 = arith.constant 0 : index
    %c0_25 = arith.constant 0 : index
    %c0_26 = arith.constant 0 : index
    %72 = vector.load %arg8[%c0_24, %c0_25, %c0_26] : memref<1x2x324xf32, #tpu.memory_space<vmem>>, vector<1x2x324xf32>
    %73 = vector.shape_cast %72 : vector<1x2x324xf32> to vector<2x324xf32>
    %74 = vector.shape_cast %71 : vector<2x324xf32> to vector<1x2x324xf32>
    tpu.vector_store %arg8[%c0_24, %c0_25, %c0_26], %74 {strides = array<i32>} : memref<1x2x324xf32, #tpu.memory_space<vmem>>, vector<1x2x324xf32>,
    return
  }
  func.func @transform_0(%arg0: i32) -> (i32, i32, i32) {
    %c0_i32 = arith.constant 0 : i32
    %c0_i32_0 = arith.constant 0 : i32
    %c0_i32_1 = arith.constant 0 : i32
    return %arg0, %c0_i32, %c0_i32_0 : i32, i32, i32
  }
  func.func @transform_1(%arg0: i32) -> (i32, i32) {
    %c0_i32 = arith.constant 0 : i32
    %c0_i32_0 = arith.constant 0 : i32
    %c0_i32_1 = arith.constant 0 : i32
    return %c0_i32, %c0_i32_0 : i32, i32
  }
  func.func @transform_2(%arg0: i32) -> (i32, i32) {
    %c0_i32 = arith.constant 0 : i32
    %c0_i32_0 = arith.constant 0 : i32
    %c0_i32_1 = arith.constant 0 : i32
    return %c0_i32, %c0_i32_0 : i32, i32
  }
  func.func @transform_3(%arg0: i32) -> (i32, i32) {
    %c0_i32 = arith.constant 0 : i32
    %c0_i32_0 = arith.constant 0 : i32
    %c0_i32_1 = arith.constant 0 : i32
    return %c0_i32, %c0_i32_0 : i32, i32
  }
  func.func @transform_4(%arg0: i32) -> (i32, i32) {
    %c0_i32 = arith.constant 0 : i32
    %c0_i32_0 = arith.constant 0 : i32
    %c0_i32_1 = arith.constant 0 : i32
    return %c0_i32, %c0_i32_0 : i32, i32
  }
  func.func @transform_5(%arg0: i32) -> (i32, i32) {
    %c0_i32 = arith.constant 0 : i32
    %c0_i32_0 = arith.constant 0 : i32
    %c0_i32_1 = arith.constant 0 : i32
    return %c0_i32, %c0_i32_0 : i32, i32
  }
  func.func @transform_6(%arg0: i32) -> (i32, i32) {
    %c0_i32 = arith.constant 0 : i32
    %c0_i32_0 = arith.constant 0 : i32
    %c0_i32_1 = arith.constant 0 : i32
    return %c0_i32, %c0_i32_0 : i32, i32
  }
  func.func @transform_7(%arg0: i32) -> (i32, i32, i32) {
    %c0_i32 = arith.constant 0 : i32
    %c0_i32_0 = arith.constant 0 : i32
    %c0_i32_1 = arith.constant 0 : i32
    return %arg0, %c0_i32, %c0_i32_0 : i32, i32, i32
  }
}

</mosaic_0001>

<llo_original>
// kernel: tpu_custom_call.1
$region0: #{tpu_custom_call.1}
  #allocation0 [shape = 'u32[]', space=smem, size = 0x4, offset = 0x4, fixed_abs, tag = 'smem constant byte address 0x4 - core index']
  #allocation1 [shape = 'u32[144,128]{1,0:T(1,128)}', space=vmem, size = 0x12000, scoped, tag = 'internal scratch']
  %s0 = inlined_call_operand.vmem [shape: f32[2,3,362], index: 0, kind: input, shape index: {}]
  %s1 = inlined_call_operand.vmem [shape: f32[1,324], index: 1, kind: input, shape index: {}]
  %s2 = inlined_call_operand.vmem [shape: bf16[16,18], index: 2, kind: input, shape index: {}]
  %s3 = inlined_call_operand.vmem [shape: f32[8,9], index: 3, kind: input, shape index: {}]
  %s4 = inlined_call_operand.vmem [shape: f32[2,8], index: 4, kind: input, shape index: {}]
  %s5 = inlined_call_operand.vmem [shape: f32[8,1], index: 5, kind: input, shape index: {}]
  %s6 = inlined_call_operand.vmem [shape: f32[8,8], index: 6, kind: input, shape index: {}]
  %s7 = inlined_call_operand.hbm [shape: f32[2,2,324], index: 7, kind: output, shape index: {}]
  %s8 = sld [smem:[#allocation0]]
  $region61: #{tpu_custom_call.1} parent=0
    _
  %s10 = ssub.s32 1, %s8
  %s11 = scalar_select 0, %s10, %s8
  $region1: #{tpu_custom_call.1} parent=0
    #allocation2 [shape = 'u8[6144]{0}', space=vmem, size = 0x1800, scoped, tag = 'output window, operand 0']
    #allocation3 [shape = 's32[2]{0}', space=sflag, size = 0x8, scoped, tag = 'scoped memory for tpu_custom_call.1']
    %12 = vsyncpa [#allocation3], 0
    %s13 = scalar_lea.sflag [#allocation3], 1
    %14 = vsyncpa %s13, 0
    loop: start=0, step=1, limit=4
    $region2: #{tpu_custom_call.1} parent=1 // loop_pre_header
      _
    $region3: #{tpu_custom_call.1} parent=1 // loop_header
      %s16 = sphi 0, %s20
      %p17 = scmp.ge.s32.totalorder %s16, 4
      %s26 = sphi 0, %s28
      %s29 = sphi 0, %s26
      %s30 = sphi 0, %s29
      %s46 = sphi 0, %s30
      %s50 = sphi 0, %s50
      %s52 = sphi 0, %s50
      %s53 = sphi 0, %s52
      %s67 = sphi 0, %s53
      %s71 = sphi 0, %s71
      %s73 = sphi 0, %s71
      %s74 = sphi 0, %s73
      %s88 = sphi 0, %s74
      %s92 = sphi 0, %s92
      %s94 = sphi 0, %s92
      %s95 = sphi 0, %s94
      %s109 = sphi 0, %s95
      %s113 = sphi 0, %s113
      %s115 = sphi 0, %s113
      %s116 = sphi 0, %s115
      %s130 = sphi 0, %s116
      %s134 = sphi 0, %s134
      %s136 = sphi 0, %s134
      %s137 = sphi 0, %s136
      %s151 = sphi 0, %s137
      %s155 = sphi 0, %s155
      %s157 = sphi 0, %s155
      %s158 = sphi 0, %s157
      %s172 = sphi 0, %s158
      %s178 = sphi 0, %s180
      %s181 = sphi 0, %s178
      %s182 = sphi 0, %s181
      %s198 = sphi 0, %s182
    $region4: #{tpu_custom_call.1} parent=1 // loop_header_branch
      %19 = sbr.rel (%p17) target = $region8
    $region5: #{tpu_custom_call.1} parent=1 // loop_body
      %s21 = ssub.s32 %s16, 1
      %s22 = ssub.s32 %s16, 2
      %s23 = sadd.s32 %s16, 1
      %s24 = ssub.s32 %s16, %s23
      %p25 = scmp.eq.s32.totalorder %s24, 0
      %s27 = sadd.s32 %s26, 1
      %s28 = scalar_select %p25, %s26, %s27
      %p31 = pneg %p25
      %p32 = scmp.eq.s32.totalorder %s16, 1
      %p33 = por %p31, %p32
      %p34 = scmp.ne.s32.totalorder %s26, %s29
      %p35 = scmp.eq.s32.totalorder %s16, 0
      %p36 = por %p34, %p35
      %p37 = scmp.ne.s32.totalorder %s26, %s29
      %p38 = scmp.eq.s32.totalorder %s21, 1
      %p39 = por %p37, %p38
      %p40 = scmp.ne.s32.totalorder %s29, %s30
      %p41 = scmp.eq.s32.totalorder %s21, 0
      %p42 = por %p40, %p41
      %p43 = scmp.ne.s32.totalorder %s29, %s30
      %p44 = scmp.eq.s32.totalorder %s22, 1
      %p45 = por %p43, %p44
      %p47 = scmp.ne.s32.totalorder %s30, %s46
      %p48 = scmp.eq.s32.totalorder %s22, 0
      %p49 = por %p47, %p48
      %s51 = sadd.s32 %s50, 1
      %p54 = scmp.eq.s32.totalorder %s16, 1
      %p55 = scmp.ne.s32.totalorder %s50, %s52
      %p56 = scmp.eq.s32.totalorder %s16, 0
      %p57 = por %p55, %p56
      %p58 = scmp.ne.s32.totalorder %s50, %s52
      %p59 = scmp.eq.s32.totalorder %s21, 1
      %p60 = por %p58, %p59
      %p61 = scmp.ne.s32.totalorder %s52, %s53
      %p62 = scmp.eq.s32.totalorder %s21, 0
      %p63 = por %p61, %p62
      %p64 = scmp.ne.s32.totalorder %s52, %s53
      %p65 = scmp.eq.s32.totalorder %s22, 1
      %p66 = por %p64, %p65
      %p68 = scmp.ne.s32.totalorder %s53, %s67
      %p69 = scmp.eq.s32.totalorder %s22, 0
      %p70 = por %p68, %p69
      %s72 = sadd.s32 %s71, 1
      %p75 = scmp.eq.s32.totalorder %s16, 1
      %p76 = scmp.ne.s32.totalorder %s71, %s73
      %p77 = scmp.eq.s32.totalorder %s16, 0
      %p78 = por %p76, %p77
      %p79 = scmp.ne.s32.totalorder %s71, %s73
      %p80 = scmp.eq.s32.totalorder %s21, 1
      %p81 = por %p79, %p80
      %p82 = scmp.ne.s32.totalorder %s73, %s74
      %p83 = scmp.eq.s32.totalorder %s21, 0
      %p84 = por %p82, %p83
      %p85 = scmp.ne.s32.totalorder %s73, %s74
      %p86 = scmp.eq.s32.totalorder %s22, 1
      %p87 = por %p85, %p86
      %p89 = scmp.ne.s32.totalorder %s74, %s88
      %p90 = scmp.eq.s32.totalorder %s22, 0
      %p91 = por %p89, %p90
      %s93 = sadd.s32 %s92, 1
      %p96 = scmp.eq.s32.totalorder %s16, 1
      %p97 = scmp.ne.s32.totalorder %s92, %s94
      %p98 = scmp.eq.s32.totalorder %s16, 0
      %p99 = por %p97, %p98
      %p100 = scmp.ne.s32.totalorder %s92, %s94
      %p101 = scmp.eq.s32.totalorder %s21, 1
      %p102 = por %p100, %p101
      %p103 = scmp.ne.s32.totalorder %s94, %s95
      %p104 = scmp.eq.s32.totalorder %s21, 0
      %p105 = por %p103, %p104
      %p106 = scmp.ne.s32.totalorder %s94, %s95
      %p107 = scmp.eq.s32.totalorder %s22, 1
      %p108 = por %p106, %p107
      %p110 = scmp.ne.s32.totalorder %s95, %s109
      %p111 = scmp.eq.s32.totalorder %s22, 0
      %p112 = por %p110, %p111
      %s114 = sadd.s32 %s113, 1
      %p117 = scmp.eq.s32.totalorder %s16, 1
      %p118 = scmp.ne.s32.totalorder %s113, %s115
      %p119 = scmp.eq.s32.totalorder %s16, 0
      %p120 = por %p118, %p119
      %p121 = scmp.ne.s32.totalorder %s113, %s115
      %p122 = scmp.eq.s32.totalorder %s21, 1
      %p123 = por %p121, %p122
      %p124 = scmp.ne.s32.totalorder %s115, %s116
      %p125 = scmp.eq.s32.totalorder %s21, 0
      %p126 = por %p124, %p125
      %p127 = scmp.ne.s32.totalorder %s115, %s116
      %p128 = scmp.eq.s32.totalorder %s22, 1
      %p129 = por %p127, %p128
      %p131 = scmp.ne.s32.totalorder %s116, %s130
      %p132 = scmp.eq.s32.totalorder %s22, 0
      %p133 = por %p131, %p132
      %s135 = sadd.s32 %s134, 1
      %p138 = scmp.eq.s32.totalorder %s16, 1
      %p139 = scmp.ne.s32.totalorder %s134, %s136
      %p140 = scmp.eq.s32.totalorder %s16, 0
      %p141 = por %p139, %p140
      %p142 = scmp.ne.s32.totalorder %s134, %s136
      %p143 = scmp.eq.s32.totalorder %s21, 1
      %p144 = por %p142, %p143
      %p145 = scmp.ne.s32.totalorder %s136, %s137
      %p146 = scmp.eq.s32.totalorder %s21, 0
      %p147 = por %p145, %p146
      %p148 = scmp.ne.s32.totalorder %s136, %s137
      %p149 = scmp.eq.s32.totalorder %s22, 1
      %p150 = por %p148, %p149
      %p152 = scmp.ne.s32.totalorder %s137, %s151
      %p153 = scmp.eq.s32.totalorder %s22, 0
      %p154 = por %p152, %p153
      %s156 = sadd.s32 %s155, 1
      %p159 = scmp.eq.s32.totalorder %s16, 1
      %p160 = scmp.ne.s32.totalorder %s155, %s157
      %p161 = scmp.eq.s32.totalorder %s16, 0
      %p162 = por %p160, %p161
      %p163 = scmp.ne.s32.totalorder %s155, %s157
      %p164 = scmp.eq.s32.totalorder %s21, 1
      %p165 = por %p163, %p164
      %p166 = scmp.ne.s32.totalorder %s157, %s158
      %p167 = scmp.eq.s32.totalorder %s21, 0
      %p168 = por %p166, %p167
      %p169 = scmp.ne.s32.totalorder %s157, %s158
      %p170 = scmp.eq.s32.totalorder %s22, 1
      %p171 = por %p169, %p170
      %p173 = scmp.ne.s32.totalorder %s158, %s172
      %p174 = scmp.eq.s32.totalorder %s22, 0
      %p175 = por %p173, %p174
      %s176 = ssub.s32 %s16, %s23
      %p177 = scmp.eq.s32.totalorder %s176, 0
      %s179 = sadd.s32 %s178, 1
      %s180 = scalar_select %p177, %s178, %s179
      %p183 = pneg %p177
      %p184 = scmp.eq.s32.totalorder %s16, 1
      %p185 = por %p183, %p184
      %p186 = scmp.ne.s32.totalorder %s178, %s181
      %p187 = scmp.eq.s32.totalorder %s16, 0
      %p188 = por %p186, %p187
      %p189 = scmp.ne.s32.totalorder %s178, %s181
      %p190 = scmp.eq.s32.totalorder %s21, 1
      %p191 = por %p189, %p190
      %p192 = scmp.ne.s32.totalorder %s181, %s182
      %p193 = scmp.eq.s32.totalorder %s21, 0
      %p194 = por %p192, %p193
      %p195 = scmp.ne.s32.totalorder %s181, %s182
      %p196 = scmp.eq.s32.totalorder %s22, 1
      %p197 = por %p195, %p196
      %p199 = scmp.ne.s32.totalorder %s182, %s198
      %p200 = scmp.eq.s32.totalorder %s22, 0
      %p201 = por %p199, %p200
      %p202 = scmp.le.s32.totalorder 1, %s16
      %p203 = scmp.lt.s32.totalorder %s16, 3
      %p204 = pnand %p202, %p203
      %p205 = pneg %p204
      // Predicated region
      $region9: #{tpu_custom_call.1} parent=5 // pred_check
        _
      $region10: #{tpu_custom_call.1} parent=5 // pred_check_branch
        %207 = sbr.rel (%p204) target = $region12
      $region11: #{tpu_custom_call.1} parent=5 // pred_region
        %s208 = ssub.s32 %s16, 1
        // Predicated region
        $region13: #{tpu_custom_call.1} parent=11 // pred_check
          %p209 = pneg %p63
        $region14: #{tpu_custom_call.1} parent=11 // pred_check_branch
          %211 = sbr.rel (%p209) target = $region16
        $region15: #{tpu_custom_call.1} parent=11 // pred_region
          _
        $region16: #{tpu_custom_call.1} parent=11 // pred_fallthru
          _
        // Predicated region
        $region17: #{tpu_custom_call.1} parent=11 // pred_check
          %p212 = pneg %p84
        $region18: #{tpu_custom_call.1} parent=11 // pred_check_branch
          %214 = sbr.rel (%p212) target = $region20
        $region19: #{tpu_custom_call.1} parent=11 // pred_region
          _
        $region20: #{tpu_custom_call.1} parent=11 // pred_fallthru
          _
        // Predicated region
        $region21: #{tpu_custom_call.1} parent=11 // pred_check
          %p215 = pneg %p105
        $region22: #{tpu_custom_call.1} parent=11 // pred_check_branch
          %217 = sbr.rel (%p215) target = $region24
        $region23: #{tpu_custom_call.1} parent=11 // pred_region
          _
        $region24: #{tpu_custom_call.1} parent=11 // pred_fallthru
          _
        // Predicated region
        $region25: #{tpu_custom_call.1} parent=11 // pred_check
          %p218 = pneg %p126
        $region26: #{tpu_custom_call.1} parent=11 // pred_check_branch
          %220 = sbr.rel (%p218) target = $region28
        $region27: #{tpu_custom_call.1} parent=11 // pred_region
          _
        $region28: #{tpu_custom_call.1} parent=11 // pred_fallthru
          _
        // Predicated region
        $region29: #{tpu_custom_call.1} parent=11 // pred_check
          %p221 = pneg %p147
        $region30: #{tpu_custom_call.1} parent=11 // pred_check_branch
          %223 = sbr.rel (%p221) target = $region32
        $region31: #{tpu_custom_call.1} parent=11 // pred_region
          _
        $region32: #{tpu_custom_call.1} parent=11 // pred_fallthru
          _
        // Predicated region
        $region33: #{tpu_custom_call.1} parent=11 // pred_check
          %p224 = pneg %p168
        $region34: #{tpu_custom_call.1} parent=11 // pred_check_branch
          %226 = sbr.rel (%p224) target = $region36
        $region35: #{tpu_custom_call.1} parent=11 // pred_region
          _
        $region36: #{tpu_custom_call.1} parent=11 // pred_fallthru
          _
      $region12: #{tpu_custom_call.1} parent=5 // pred_fallthru
        _
      %p227 = scmp.lt.s32.totalorder %s16, 2
      // Predicated region
      $region37: #{tpu_custom_call.1} parent=5 // pred_check
        %p228 = pneg %p227
      $region38: #{tpu_custom_call.1} parent=5 // pred_check_branch
        %230 = sbr.rel (%p228) target = $region40
      $region39: #{tpu_custom_call.1} parent=5 // pred_region
        // Predicated region
        $region41: #{tpu_custom_call.1} parent=39 // pred_check
          %p231 = pneg %p36
        $region42: #{tpu_custom_call.1} parent=39 // pred_check_branch
          %233 = sbr.rel (%p231) target = $region44
        $region43: #{tpu_custom_call.1} parent=39 // pred_region
          %p234 = scmp.lt.s32.totalorder %s16, 1
          %s235 = scalar_select %p234, %s16, 1
          %s236 = smul.addr %s235, 3
          %s237 = smul.addr %s236, 4
          %s238 = scalar_lea.vmem %s0, %s237
        $region44: #{tpu_custom_call.1} parent=39 // pred_fallthru
          _
      $region40: #{tpu_custom_call.1} parent=5 // pred_fallthru
        _
      %p239 = scmp.le.s32.totalorder 1, %s16
      %p240 = scmp.lt.s32.totalorder %s16, 3
      %p241 = pnand %p239, %p240
      %p242 = pneg %p241
      // Predicated region
      $region45: #{tpu_custom_call.1} parent=5 // pred_check
        _
      $region46: #{tpu_custom_call.1} parent=5 // pred_check_branch
        %244 = sbr.rel (%p241) target = $region48
      $region47: #{tpu_custom_call.1} parent=5 // pred_region
        %s245 = ssub.s32 %s16, 1
        %p246 = scmp.lt.s32.totalorder %s21, 1
        %s247 = scalar_select %p246, %s21, 1
        %s248 = smul.addr %s247, 3
        %s249 = smul.addr %s248, 4
        %s250 = scalar_lea.vmem %s0, %s249
        %p251 = pneg %p42
        %p252 = pneg %p39
        %p253 = pneg %p63
        %p254 = pneg %p60
        %p255 = pneg %p84
        %p256 = pneg %p81
        %p257 = pneg %p105
        %p258 = pneg %p102
        %p259 = pneg %p126
        %p260 = pneg %p123
        %p261 = pneg %p147
        %p262 = pneg %p144
        %p263 = pneg %p168
        %p264 = pneg %p165
        %p265 = pneg %p194
        %p266 = pneg %p191
        %s267 = sand.u32 %s181, 1
        %s268 = scalar_lea.sflag [#allocation3], %s267
        %s269 = sand.u32 %s181, 1
        %s270 = smul.addr %s269, 6
        %s271 = scalar_lea.vmem [#allocation2], %s270
        %p272 = scmp.lt.s32.totalorder %s21, 1
        %s273 = scalar_select %p272, %s21, 1
        %s274 = smul.addr %s273, 3
        %s275 = smul.addr %s274, 4
        %s276 = scalar_lea.vmem %s0, %s275
        %v278 = vld [vmem:[%s2] sm:$0xf]
        %v279 = vld [vmem:[%s2 + $0x4] sm:$0xf]
        %v280 = vld [vmem:[%s3] sm:$0xff]
        %v281 = vld [vmem:[%s4] sm:$0x3]
        %v282 = vld [vmem:[%s5] sm:$0xff]
        %v283 = vld [vmem:[%s6] sm:$0xff]
        %v284 = vld [vmem:[%s1] sm:$0x7]
        %v285 = vld [vmem:[%s276] sm:$0x77]
        %v286 = vld [vmem:[%s276 + $0x8] sm:$0x7]
        %v289 = vcombine.high %v285, %v285
        %v291 = vpack.c.bf16 %v285, %v285
        %v292 = vpack.c.bf16 %v289, %v289
        %v293 = vpack.c.bf16 %v286, %v286
        %v297 = vrot.slane %v291, 7
        %v298 = vrot.slane %v292, 7
        %v299 = vrot.slane %v293, 7
        %300 = vrot.lane.b32.xlu0 %v297, 127
        %v301 = vpop.permute.xlu0 %300
        %302 = vrot.lane.b32.xlu0 %v298, 127
        %v303 = vpop.permute.xlu0 %302
        %304 = vrot.lane.b32.xlu0 %v299, 127
        %v305 = vpop.permute.xlu0 %304
        %vm306 = vcmask 1039360
        %v307 = vsel %vm306, %v301, %v303
        %v308 = vsel %vm306, %v303, %v305
        %v309 = vrot.slane %v291, 6
        %v310 = vrot.slane %v292, 6
        %v311 = vrot.slane %v293, 6
        %312 = vrot.lane.b32.xlu0 %v309, 126
        %v313 = vpop.permute.xlu0 %312
        %314 = vrot.lane.b32.xlu0 %v310, 126
        %v315 = vpop.permute.xlu0 %314
        %316 = vrot.lane.b32.xlu0 %v311, 126
        %v317 = vpop.permute.xlu0 %316
        %vm318 = vcmask 1031168
        %v319 = vsel %vm318, %v313, %v315
        %v320 = vsel %vm318, %v315, %v317
        %v321 = vrot.slane %v291, 5
        %v322 = vrot.slane %v292, 5
        %v323 = vrot.slane %v293, 5
        %324 = vrot.lane.b32.xlu0 %v321, 110
        %v325 = vpop.permute.xlu0 %324
        %326 = vrot.lane.b32.xlu0 %v322, 110
        %v327 = vpop.permute.xlu0 %326
        %328 = vrot.lane.b32.xlu0 %v323, 110
        %v329 = vpop.permute.xlu0 %328
        %vm330 = vcmask 900096
        %v331 = vsel %vm330, %v325, %v327
        %v332 = vsel %vm330, %v327, %v329
        %v333 = vrot.slane %v291, 4
        %v334 = vrot.slane %v292, 4
        %v335 = vrot.slane %v293, 4
        %336 = vrot.lane.b32.xlu0 %v333, 109
        %v337 = vpop.permute.xlu0 %336
        %338 = vrot.lane.b32.xlu0 %v334, 109
        %v339 = vpop.permute.xlu0 %338
        %340 = vrot.lane.b32.xlu0 %v335, 109
        %v341 = vpop.permute.xlu0 %340
        %vm342 = vcmask 891904
        %v343 = vsel %vm342, %v337, %v339
        %v344 = vsel %vm342, %v339, %v341
        %v345 = vrot.slane %v291, 3
        %v346 = vrot.slane %v292, 3
        %v347 = vrot.slane %v293, 3
        %348 = vrot.lane.b32.xlu0 %v345, 108
        %v349 = vpop.permute.xlu0 %348
        %350 = vrot.lane.b32.xlu0 %v346, 108
        %v351 = vpop.permute.xlu0 %350
        %352 = vrot.lane.b32.xlu0 %v347, 108
        %v353 = vpop.permute.xlu0 %352
        %vm354 = vcmask 883712
        %v355 = vsel %vm354, %v349, %v351
        %v356 = vsel %vm354, %v351, %v353
        %v357 = vrot.slane %v291, 2
        %v358 = vrot.slane %v292, 2
        %v359 = vrot.slane %v293, 2
        %360 = vrot.lane.b32.xlu0 %v357, 92
        %v361 = vpop.permute.xlu0 %360
        %362 = vrot.lane.b32.xlu0 %v358, 92
        %v363 = vpop.permute.xlu0 %362
        %364 = vrot.lane.b32.xlu0 %v359, 92
        %v365 = vpop.permute.xlu0 %364
        %vm366 = vcmask 752640
        %v367 = vsel %vm366, %v361, %v363
        %v368 = vsel %vm366, %v363, %v365
        %v369 = vrot.slane %v291, 1
        %v370 = vrot.slane %v292, 1
        %v371 = vrot.slane %v293, 1
        %372 = vrot.lane.b32.xlu0 %v369, 91
        %v373 = vpop.permute.xlu0 %372
        %374 = vrot.lane.b32.xlu0 %v370, 91
        %v375 = vpop.permute.xlu0 %374
        %376 = vrot.lane.b32.xlu0 %v371, 91
        %v377 = vpop.permute.xlu0 %376
        %vm378 = vcmask 744448
        %v379 = vsel %vm378, %v373, %v375
        %v380 = vsel %vm378, %v375, %v377
        %381 = vrot.lane.b32.xlu0 %v291, 90
        %v382 = vpop.permute.xlu0 %381
        %383 = vrot.lane.b32.xlu0 %v292, 90
        %v384 = vpop.permute.xlu0 %383
        %385 = vrot.lane.b32.xlu0 %v293, 90
        %v386 = vpop.permute.xlu0 %385
        %vm387 = vcmask 736256
        %v388 = vsel %vm387, %v382, %v384
        %v389 = vsel %vm387, %v384, %v386
        %vm390 = vcmask 1040384
        %v393 = vsel %vm390, %v291, %v307
        %v396 = vsel %vm390, %v292, %v308
        %v399 = vsel %vm390, %v293, %v305
        %vm400 = vcmask 1041408
        %v402 = vsel %vm400, %v393, %v319
        %v404 = vsel %vm400, %v396, %v320
        %v406 = vsel %vm400, %v399, %v317
        %vm407 = vcmask 1042432
        %v409 = vsel %vm407, %v402, %v331
        %v411 = vsel %vm407, %v404, %v332
        %v413 = vsel %vm407, %v406, %v329
        %vm414 = vcmask 1043456
        %v416 = vsel %vm414, %v409, %v343
        %v418 = vsel %vm414, %v411, %v344
        %v420 = vsel %vm414, %v413, %v341
        %vm421 = vcmask 1044480
        %v423 = vsel %vm421, %v416, %v355
        %v425 = vsel %vm421, %v418, %v356
        %v427 = vsel %vm421, %v420, %v353
        %vm428 = vcmask 1045504
        %v430 = vsel %vm428, %v423, %v367
        %v432 = vsel %vm428, %v425, %v368
        %v434 = vsel %vm428, %v427, %v365
        %vm435 = vcmask 1046528
        %v437 = vsel %vm435, %v430, %v379
        %v440 = vsel %vm435, %v432, %v380
        %v443 = vsel %vm435, %v434, %v377
        %v445 = vlaneseq
        %v446 = vshrl.u32 %v445, 7
        %v447 = vsub.s32 2, %v446
        %v448 = vrot.slane %v285, %v447
        %v449 = vlaneseq
        %v450 = vshrl.u32 %v449, 7
        %v451 = vsub.s32 6, %v450
        %v452 = vrot.slane %v285, %v451
        %v453 = vlaneseq
        %v454 = vshrl.u32 %v453, 7
        %v455 = vsub.s32 2, %v454
        %v456 = vrot.slane %v286, %v455
        %460 = vrot.lane.b32.xlu0 %v448, 127
        %v461 = vpop.permute.xlu0 %460
        %462 = vrot.lane.b32.xlu0 %v452, 127
        %v463 = vpop.permute.xlu0 %462
        %464 = vrot.lane.b32.xlu0 %v456, 127
        %v465 = vpop.permute.xlu0 %464
        %vm466 = vcmask 1039360
        %v467 = vsel %vm466, %v461, %v463
        %v468 = vsel %vm466, %v463, %v465
        %472 = vrot.lane.b32.xlu0 %v448, 126
        %v473 = vpop.permute.xlu0 %472
        %474 = vrot.lane.b32.xlu0 %v452, 126
        %v475 = vpop.permute.xlu0 %474
        %476 = vrot.lane.b32.xlu0 %v456, 126
        %v477 = vpop.permute.xlu0 %476
        %vm478 = vcmask 1031168
        %v479 = vsel %vm478, %v473, %v475
        %v480 = vsel %vm478, %v475, %v477
        %484 = vrot.lane.b32.xlu0 %v448, 110
        %v485 = vpop.permute.xlu0 %484
        %486 = vrot.lane.b32.xlu0 %v452, 110
        %v487 = vpop.permute.xlu0 %486
        %488 = vrot.lane.b32.xlu0 %v456, 110
        %v489 = vpop.permute.xlu0 %488
        %vm490 = vcmask 900096
        %v491 = vsel %vm490, %v485, %v487
        %v492 = vsel %vm490, %v487, %v489
        %496 = vrot.lane.b32.xlu0 %v448, 109
        %v497 = vpop.permute.xlu0 %496
        %498 = vrot.lane.b32.xlu0 %v452, 109
        %v499 = vpop.permute.xlu0 %498
        %500 = vrot.lane.b32.xlu0 %v456, 109
        %v501 = vpop.permute.xlu0 %500
        %vm502 = vcmask 891904
        %v503 = vsel %vm502, %v497, %v499
        %v504 = vsel %vm502, %v499, %v501
        %508 = vrot.lane.b32.xlu0 %v448, 108
        %v509 = vpop.permute.xlu0 %508
        %510 = vrot.lane.b32.xlu0 %v452, 108
        %v511 = vpop.permute.xlu0 %510
        %512 = vrot.lane.b32.xlu0 %v456, 108
        %v513 = vpop.permute.xlu0 %512
        %vm514 = vcmask 883712
        %v515 = vsel %vm514, %v509, %v511
        %v516 = vsel %vm514, %v511, %v513
        %520 = vrot.lane.b32.xlu0 %v448, 92
        %v521 = vpop.permute.xlu0 %520
        %522 = vrot.lane.b32.xlu0 %v452, 92
        %v523 = vpop.permute.xlu0 %522
        %524 = vrot.lane.b32.xlu0 %v456, 92
        %v525 = vpop.permute.xlu0 %524
        %vm526 = vcmask 752640
        %v527 = vsel %vm526, %v521, %v523
        %v528 = vsel %vm526, %v523, %v525
        %532 = vrot.lane.b32.xlu0 %v448, 91
        %v533 = vpop.permute.xlu0 %532
        %534 = vrot.lane.b32.xlu0 %v452, 91
        %v535 = vpop.permute.xlu0 %534
        %536 = vrot.lane.b32.xlu0 %v456, 91
        %v537 = vpop.permute.xlu0 %536
        %vm538 = vcmask 744448
        %v539 = vsel %vm538, %v533, %v535
        %v540 = vsel %vm538, %v535, %v537
        %544 = vrot.lane.b32.xlu0 %v448, 90
        %v545 = vpop.permute.xlu0 %544
        %546 = vrot.lane.b32.xlu0 %v452, 90
        %v547 = vpop.permute.xlu0 %546
        %548 = vrot.lane.b32.xlu0 %v456, 90
        %v549 = vpop.permute.xlu0 %548
        %vm550 = vcmask 736256
        %v551 = vsel %vm550, %v545, %v547
        %v552 = vsel %vm550, %v547, %v549
        %v553 = vsel %vm390, %v448, %v467
        %v554 = vsel %vm390, %v452, %v468
        %v555 = vsel %vm390, %v456, %v465
        %v556 = vsel %vm400, %v553, %v479
        %v557 = vsel %vm400, %v554, %v480
        %v558 = vsel %vm400, %v555, %v477
        %v559 = vsel %vm407, %v556, %v491
        %v560 = vsel %vm407, %v557, %v492
        %v561 = vsel %vm407, %v558, %v489
        %v562 = vsel %vm414, %v559, %v503
        %v563 = vsel %vm414, %v560, %v504
        %v564 = vsel %vm414, %v561, %v501
        %v565 = vsel %vm421, %v562, %v515
        %v566 = vsel %vm421, %v563, %v516
        %v567 = vsel %vm421, %v564, %v513
        %v568 = vsel %vm428, %v565, %v527
        %v569 = vsel %vm428, %v566, %v528
        %v570 = vsel %vm428, %v567, %v525
        %v571 = vsel %vm435, %v568, %v539
        %v572 = vsel %vm435, %v569, %v540
        %v573 = vsel %vm435, %v570, %v537
        %v576 = vunpack.c.l.b16 %v278
        %v577 = vunpack.c.l.b16 %v279
        %v578 = vpack.c.b16 %v577, %v576
        %vm579 = vcmask 146432
        %v581 = vsel %vm579, %v578, 0
        %v584 = vsel %vm390, %v388, 0
        %v587 = vsel %vm390, %v389, 0
        %v590 = vsel %vm390, %v386, 0
        %592 = vmatprep.subr.bf16.mxu0 0
        %593 = vmatpush1.bf16.msra.mxu0 0
        %594 = vmatprep.subr.bf16.mxu0 0
        %595 = vmatpush1.bf16.msra.mxu0 0
        %596 = vmatprep.subr.bf16.mxu0 0
        %597 = vmatpush1.bf16.msra.mxu0 0
        %598 = vmatprep.subr.bf16.mxu0 0
        %599 = vmatpush1.bf16.msra.mxu0 0
        %600 = vmatprep.subr.bf16.mxu0 0
        %601 = vmatpush1.bf16.msra.mxu0 0
        %602 = vmatprep.subr.bf16.mxu0 0
        %603 = vmatpush1.bf16.msra.mxu0 0
        %604 = vmatprep.subr.bf16.mxu0 %v587
        %605 = vmatpush1.bf16.msra.mxu0 %v584
        %606 = vmatprep.subr.bf16.mxu0 %v440
        %607 = vmatpush1.bf16.msra.mxu0 %v437
        %608 = vmatprep.subr.bf16.mxu0 0
        %609 = vmatpush2.bf16.msra.mxu0 0
        %610 = vmatprep.subr.bf16.mxu0 0
        %611 = vmatpush2.bf16.msra.mxu0 0
        %612 = vmatprep.subr.bf16.mxu0 0
        %613 = vmatpush2.bf16.msra.mxu0 0
        %614 = vmatprep.subr.bf16.mxu0 0
        %615 = vmatpush2.bf16.msra.mxu0 0
        %616 = vmatprep.subr.bf16.mxu0 0
        %617 = vmatpush2.bf16.msra.mxu0 0
        %618 = vmatprep.subr.bf16.mxu0 0
        %619 = vmatpush2.bf16.msra.mxu0 0
        %620 = vmatprep.subr.bf16.mxu0 0
        %621 = vmatpush2.bf16.msra.mxu0 0
        %622 = vmatprep.subr.bf16.mxu0 0
        %623 = vmatpush2.bf16.msra.mxu0 0
        %624 = vmatprep.mubr.bf16.mxu0 0
        %625 = vmatmul.mubr.bf16.gmra.mxu0 %v581
        %v626 = vpop.f32.mrf.mxu0
        %v627 = vadd.f32 0.0, %v626
        %v628 = vpop.f32.mrf.mxu0
        %v629 = vadd.f32 0.0, %v628
        %v630 = vpop.f32.mrf.mxu0
        %v631 = vadd.f32 0.0, %v630
        %v632 = vpop.f32.mrf.mxu0
        %v633 = vadd.f32 0.0, %v632
        %634 = vdwg.mxu0
        %635 = vmatprep.subr.bf16.mxu0 0
        %636 = vmatpush1.bf16.msra.mxu0 0
        %637 = vmatprep.subr.bf16.mxu0 0
        %638 = vmatpush1.bf16.msra.mxu0 0
        %639 = vmatprep.subr.bf16.mxu0 0
        %640 = vmatpush1.bf16.msra.mxu0 0
        %641 = vmatprep.subr.bf16.mxu0 0
        %642 = vmatpush1.bf16.msra.mxu0 0
        %643 = vmatprep.subr.bf16.mxu0 0
        %644 = vmatpush1.bf16.msra.mxu0 0
        %645 = vmatprep.subr.bf16.mxu0 0
        %646 = vmatpush1.bf16.msra.mxu0 0
        %647 = vmatprep.subr.bf16.mxu0 0
        %648 = vmatpush1.bf16.msra.mxu0 %v590
        %649 = vmatprep.subr.bf16.mxu0 0
        %650 = vmatpush1.bf16.msra.mxu0 %v443
        %651 = vmatprep.subr.bf16.mxu0 0
        %652 = vmatpush2.bf16.msra.mxu0 0
        %653 = vmatprep.subr.bf16.mxu0 0
        %654 = vmatpush2.bf16.msra.mxu0 0
        %655 = vmatprep.subr.bf16.mxu0 0
        %656 = vmatpush2.bf16.msra.mxu0 0
        %657 = vmatprep.subr.bf16.mxu0 0
        %658 = vmatpush2.bf16.msra.mxu0 0
        %659 = vmatprep.subr.bf16.mxu0 0
        %660 = vmatpush2.bf16.msra.mxu0 0
        %661 = vmatprep.subr.bf16.mxu0 0
        %662 = vmatpush2.bf16.msra.mxu0 0
        %663 = vmatprep.subr.bf16.mxu0 0
        %664 = vmatpush2.bf16.msra.mxu0 0
        %665 = vmatprep.subr.bf16.mxu0 0
        %666 = vmatpush2.bf16.msra.mxu0 0
        %667 = vmatprep.mubr.bf16.mxu0 0
        %668 = vmatmul.mubr.bf16.gmra.mxu0 %v581
        %v669 = vpop.f32.mrf.mxu0
        %v670 = vadd.f32 0.0, %v669
        %v671 = vpop.f32.mrf.mxu0
        %v672 = vpop.f32.mrf.mxu0
        %v673 = vadd.f32 0.0, %v672
        %v674 = vpop.f32.mrf.mxu0
        %675 = vdwg.mxu0
        %vm676 = vcmask 72704
        %v678 = vsel %vm676, %v280, 0
        %v680 = vsel %vm390, %v551, 0
        %v682 = vsel %vm390, %v552, 0
        %v684 = vsel %vm390, %v549, 0
        %686 = vmatprep.subr.mxu0 0.0
        %687 = vmatpush1.msra.mxu0 0.0
        %688 = vmatprep.subr.mxu0 0.0
        %689 = vmatpush1.msra.mxu0 0.0
        %690 = vmatprep.subr.mxu0 0.0
        %691 = vmatpush1.msra.mxu0 0.0
        %692 = vmatprep.subr.mxu0 0.0
        %693 = vmatpush1.msra.mxu0 0.0
        %694 = vmatprep.subr.mxu0 0.0
        %695 = vmatpush1.msra.mxu0 0.0
        %696 = vmatprep.subr.mxu0 0.0
        %697 = vmatpush1.msra.mxu0 0.0
        %698 = vmatprep.subr.mxu0 0.0
        %699 = vmatpush1.msra.mxu0 0.0
        %700 = vmatprep.subr.mxu0 0.0
        %701 = vmatpush1.msra.mxu0 0.0
        %702 = vmatprep.subr.mxu0 0.0
        %703 = vmatpush1.msra.mxu0 0.0
        %704 = vmatprep.subr.mxu0 0.0
        %705 = vmatpush1.msra.mxu0 0.0
        %706 = vmatprep.subr.mxu0 0.0
        %707 = vmatpush1.msra.mxu0 0.0
        %708 = vmatprep.subr.mxu0 0.0
        %709 = vmatpush1.msra.mxu0 0.0
        %710 = vmatprep.subr.mxu0 0.0
        %711 = vmatpush1.msra.mxu0 0.0
        %712 = vmatprep.subr.mxu0 0.0
        %713 = vmatpush1.msra.mxu0 0.0
        %714 = vmatprep.subr.mxu0 %v682
        %715 = vmatpush1.msra.mxu0 %v680
        %716 = vmatprep.subr.mxu0 %v572
        %717 = vmatpush1.msra.mxu0 %v571
        %718 = vmatprep.subr.mxu0 0.0
        %719 = vmatpush2.msra.mxu0 0.0
        %720 = vmatprep.subr.mxu0 0.0
        %721 = vmatpush2.msra.mxu0 0.0
        %722 = vmatprep.subr.mxu0 0.0
        %723 = vmatpush2.msra.mxu0 0.0
        %724 = vmatprep.subr.mxu0 0.0
        %725 = vmatpush2.msra.mxu0 0.0
        %726 = vmatprep.subr.mxu0 0.0
        %727 = vmatpush2.msra.mxu0 0.0
        %728 = vmatprep.subr.mxu0 0.0
        %729 = vmatpush2.msra.mxu0 0.0
        %730 = vmatprep.subr.mxu0 0.0
        %731 = vmatpush2.msra.mxu0 0.0
        %732 = vmatprep.subr.mxu0 0.0
        %733 = vmatpush2.msra.mxu0 0.0
        %734 = vmatprep.subr.mxu0 0.0
        %735 = vmatpush2.msra.mxu0 0.0
        %736 = vmatprep.subr.mxu0 0.0
        %737 = vmatpush2.msra.mxu0 0.0
        %738 = vmatprep.subr.mxu0 0.0
        %739 = vmatpush2.msra.mxu0 0.0
        %740 = vmatprep.subr.mxu0 0.0
        %741 = vmatpush2.msra.mxu0 0.0
        %742 = vmatprep.subr.mxu0 0.0
        %743 = vmatpush2.msra.mxu0 0.0
        %744 = vmatprep.subr.mxu0 0.0
        %745 = vmatpush2.msra.mxu0 0.0
        %746 = vmatprep.subr.mxu0 0.0
        %747 = vmatpush2.msra.mxu0 0.0
        %748 = vmatprep.subr.mxu0 0.0
        %749 = vmatpush2.msra.mxu0 0.0
        %750 = vmatprep.mubr.f32.mxu0 0.0
        %751 = vmatmul.mubr.f32.gmra.mxu0 %v678
        %v752 = vpop.f32.mrf.mxu0
        %v753 = vadd.f32 0.0, %v752
        %v754 = vpop.f32.mrf.mxu0
        %v755 = vadd.f32 0.0, %v754
        %756 = vdwg.mxu0
        %757 = vmatprep.subr.mxu0 0.0
        %758 = vmatpush1.msra.mxu0 0.0
        %759 = vmatprep.subr.mxu0 0.0
        %760 = vmatpush1.msra.mxu0 0.0
        %761 = vmatprep.subr.mxu0 0.0
        %762 = vmatpush1.msra.mxu0 0.0
        %763 = vmatprep.subr.mxu0 0.0
        %764 = vmatpush1.msra.mxu0 0.0
        %765 = vmatprep.subr.mxu0 0.0
        %766 = vmatpush1.msra.mxu0 0.0
        %767 = vmatprep.subr.mxu0 0.0
        %768 = vmatpush1.msra.mxu0 0.0
        %769 = vmatprep.subr.mxu0 0.0
        %770 = vmatpush1.msra.mxu0 0.0
        %771 = vmatprep.subr.mxu0 0.0
        %772 = vmatpush1.msra.mxu0 0.0
        %773 = vmatprep.subr.mxu0 0.0
        %774 = vmatpush1.msra.mxu0 0.0
        %775 = vmatprep.subr.mxu0 0.0
        %776 = vmatpush1.msra.mxu0 0.0
        %777 = vmatprep.subr.mxu0 0.0
        %778 = vmatpush1.msra.mxu0 0.0
        %779 = vmatprep.subr.mxu0 0.0
        %780 = vmatpush1.msra.mxu0 0.0
        %781 = vmatprep.subr.mxu0 0.0
        %782 = vmatpush1.msra.mxu0 0.0
        %783 = vmatprep.subr.mxu0 0.0
        %784 = vmatpush1.msra.mxu0 0.0
        %785 = vmatprep.subr.mxu0 0.0
        %786 = vmatpush1.msra.mxu0 %v684
        %787 = vmatprep.subr.mxu0 0.0
        %788 = vmatpush1.msra.mxu0 %v573
        %789 = vmatprep.subr.mxu0 0.0
        %790 = vmatpush2.msra.mxu0 0.0
        %791 = vmatprep.subr.mxu0 0.0
        %792 = vmatpush2.msra.mxu0 0.0
        %793 = vmatprep.subr.mxu0 0.0
        %794 = vmatpush2.msra.mxu0 0.0
        %795 = vmatprep.subr.mxu0 0.0
        %796 = vmatpush2.msra.mxu0 0.0
        %797 = vmatprep.subr.mxu0 0.0
        %798 = vmatpush2.msra.mxu0 0.0
        %799 = vmatprep.subr.mxu0 0.0
        %800 = vmatpush2.msra.mxu0 0.0
        %801 = vmatprep.subr.mxu0 0.0
        %802 = vmatpush2.msra.mxu0 0.0
        %803 = vmatprep.subr.mxu0 0.0
        %804 = vmatpush2.msra.mxu0 0.0
        %805 = vmatprep.subr.mxu0 0.0
        %806 = vmatpush2.msra.mxu0 0.0
        %807 = vmatprep.subr.mxu0 0.0
        %808 = vmatpush2.msra.mxu0 0.0
        %809 = vmatprep.subr.mxu0 0.0
        %810 = vmatpush2.msra.mxu0 0.0
        %811 = vmatprep.subr.mxu0 0.0
        %812 = vmatpush2.msra.mxu0 0.0
        %813 = vmatprep.subr.mxu0 0.0
        %814 = vmatpush2.msra.mxu0 0.0
        %815 = vmatprep.subr.mxu0 0.0
        %816 = vmatpush2.msra.mxu0 0.0
        %817 = vmatprep.subr.mxu0 0.0
        %818 = vmatpush2.msra.mxu0 0.0
        %819 = vmatprep.subr.mxu0 0.0
        %820 = vmatpush2.msra.mxu0 0.0
        %821 = vmatprep.mubr.f32.mxu0 0.0
        %822 = vmatmul.mubr.f32.gmra.mxu0 %v678
        %v823 = vpop.f32.mrf.mxu0
        %v824 = vadd.f32 0.0, %v823
        %v825 = vpop.f32.mrf.mxu0
        %826 = vdwg.mxu0
        %v827 = vmul.f32 %v627, %v627
        %v828 = vmul.f32 %v629, %v629
        %v829 = vmul.f32 %v670, %v670
        %v831 = vlaneseq
        %v832 = vshrl.u32 %v831, 7
        %v833 = vsub.s32 0, %v832
        %v834 = vrot.slane %v284, %v833
        %v835 = vlaneseq
        %v836 = vshrl.u32 %v835, 7
        %v837 = vsub.s32 1, %v836
        %v838 = vrot.slane %v284, %v837
        %v839 = vlaneseq
        %v840 = vshrl.u32 %v839, 7
        %v841 = vsub.s32 2, %v840
        %v842 = vrot.slane %v284, %v841
        %v846 = vmul.f32 %v827, %v834
        %v847 = vmul.f32 %v828, %v838
        %v848 = vmul.f32 %v829, %v842
        %v849 = vadd.f32 %v846, %v847
        %vm850 = vcmask 556032
        %v851 = vsel %vm850, %v848, 0.0
        %v852 = vadd.f32 %v849, %v851
        %853 = vadd.xlane.f32.xlu0 %v852
        %v854 = vpop.xlane.xlu0 %853
        %v855 = vmax.f32 %v854, 1e-24
        %v856 = vrsqrt.pop %v855
        %v857 = vmul.f32 %v627, %v856
        %v858 = vmul.f32 %v629, %v856
        %v859 = vmul.f32 %v670, %v856
        %v860 = vmul.f32 %v753, %v834
        %v861 = vmul.f32 %v755, %v838
        %v862 = vmul.f32 %v824, %v842
        %v863 = vmul.f32 %v860, %v860
        %v864 = vmul.f32 %v861, %v861
        %v865 = vmul.f32 %v862, %v862
        %v866 = vadd.f32 %v863, %v864
        %v867 = vsel %vm850, %v865, 0.0
        %v868 = vadd.f32 %v866, %v867
        %869 = vadd.xlane.f32.xlu0 %v868
        %v870 = vpop.xlane.xlu0 %869
        %v871 = vmax.f32 %v870, 1e-24
        %v872 = vrsqrt.pop %v871
        %v873 = vmul.f32 %v860, %v872
        %v874 = vmul.f32 %v861, %v872
        %v875 = vmul.f32 %v862, %v872
        %v877 = vsel %vm850, %v859, 0
        %v880 = vsel %vm850, %v875, 0
        %882 = vmatprep.subr.mxu0 0.0
        %883 = vmatpush1.xpose.msra.mxu0 0.0
        %884 = vmatprep.subr.mxu0 0.0
        %885 = vmatpush1.xpose.msra.mxu0 0.0
        %886 = vmatprep.subr.mxu0 0.0
        %887 = vmatpush1.xpose.msra.mxu0 0.0
        %888 = vmatprep.subr.mxu0 0.0
        %889 = vmatpush1.xpose.msra.mxu0 0.0
        %890 = vmatprep.subr.mxu0 0.0
        %891 = vmatpush1.xpose.msra.mxu0 0.0
        %892 = vmatprep.subr.mxu0 0.0
        %893 = vmatpush1.xpose.msra.mxu0 0.0
        %894 = vmatprep.subr.mxu0 0.0
        %895 = vmatpush1.xpose.msra.mxu0 0.0
        %896 = vmatprep.subr.mxu0 0.0
        %897 = vmatpush1.xpose.msra.mxu0 0.0
        %898 = vmatprep.subr.mxu0 0.0
        %899 = vmatpush1.xpose.msra.mxu0 0.0
        %900 = vmatprep.subr.mxu0 0.0
        %901 = vmatpush1.xpose.msra.mxu0 0.0
        %902 = vmatprep.subr.mxu0 0.0
        %903 = vmatpush1.xpose.msra.mxu0 0.0
        %904 = vmatprep.subr.mxu0 0.0
        %905 = vmatpush1.xpose.msra.mxu0 0.0
        %906 = vmatprep.subr.mxu0 0.0
        %907 = vmatpush1.xpose.msra.mxu0 0.0
        %908 = vmatprep.subr.mxu0 0.0
        %909 = vmatpush1.xpose.msra.mxu0 0.0
        %910 = vmatprep.subr.mxu0 0.0
        %911 = vmatpush1.xpose.msra.mxu0 0.0
        %912 = vmatprep.subr.mxu0 %v874
        %913 = vmatpush1.xpose.msra.mxu0 %v873
        %914 = vmatprep.subr.mxu0 0.0
        %915 = vmatpush2.xpose.msra.mxu0 0.0
        %916 = vmatprep.subr.mxu0 0.0
        %917 = vmatpush2.xpose.msra.mxu0 0.0
        %918 = vmatprep.subr.mxu0 0.0
        %919 = vmatpush2.xpose.msra.mxu0 0.0
        %920 = vmatprep.subr.mxu0 0.0
        %921 = vmatpush2.xpose.msra.mxu0 0.0
        %922 = vmatprep.subr.mxu0 0.0
        %923 = vmatpush2.xpose.msra.mxu0 0.0
        %924 = vmatprep.subr.mxu0 0.0
        %925 = vmatpush2.xpose.msra.mxu0 0.0
        %926 = vmatprep.subr.mxu0 0.0
        %927 = vmatpush2.xpose.msra.mxu0 0.0
        %928 = vmatprep.subr.mxu0 0.0
        %929 = vmatpush2.xpose.msra.mxu0 0.0
        %930 = vmatprep.subr.mxu0 0.0
        %931 = vmatpush2.xpose.msra.mxu0 0.0
        %932 = vmatprep.subr.mxu0 0.0
        %933 = vmatpush2.xpose.msra.mxu0 0.0
        %934 = vmatprep.subr.mxu0 0.0
        %935 = vmatpush2.xpose.msra.mxu0 0.0
        %936 = vmatprep.subr.mxu0 0.0
        %937 = vmatpush2.xpose.msra.mxu0 0.0
        %938 = vmatprep.subr.mxu0 0.0
        %939 = vmatpush2.xpose.msra.mxu0 0.0
        %940 = vmatprep.subr.mxu0 0.0
        %941 = vmatpush2.xpose.msra.mxu0 0.0
        %942 = vmatprep.subr.mxu0 0.0
        %943 = vmatpush2.xpose.msra.mxu0 0.0
        %944 = vmatprep.subr.mxu0 0.0
        %945 = vmatpush2.xpose.msra.mxu0 0.0
        %946 = vmatprep.mubr.f32.mxu0 %v858
        %947 = vmatmul.mubr.f32.gmra.mxu0 %v857
        %v948 = vpop.f32.mrf.mxu0
        %v949 = vadd.f32 0.0, %v948
        %v950 = vpop.f32.mrf.mxu0
        %951 = vdwg.mxu0
        %952 = vmatprep.subr.mxu0 0.0
        %953 = vmatpush1.xpose.msra.mxu0 0.0
        %954 = vmatprep.subr.mxu0 0.0
        %955 = vmatpush1.xpose.msra.mxu0 0.0
        %956 = vmatprep.subr.mxu0 0.0
        %957 = vmatpush1.xpose.msra.mxu0 0.0
        %958 = vmatprep.subr.mxu0 0.0
        %959 = vmatpush1.xpose.msra.mxu0 0.0
        %960 = vmatprep.subr.mxu0 0.0
        %961 = vmatpush1.xpose.msra.mxu0 0.0
        %962 = vmatprep.subr.mxu0 0.0
        %963 = vmatpush1.xpose.msra.mxu0 0.0
        %964 = vmatprep.subr.mxu0 0.0
        %965 = vmatpush1.xpose.msra.mxu0 0.0
        %966 = vmatprep.subr.mxu0 0.0
        %967 = vmatpush1.xpose.msra.mxu0 0.0
        %968 = vmatprep.subr.mxu0 0.0
        %969 = vmatpush1.xpose.msra.mxu0 0.0
        %970 = vmatprep.subr.mxu0 0.0
        %971 = vmatpush1.xpose.msra.mxu0 0.0
        %972 = vmatprep.subr.mxu0 0.0
        %973 = vmatpush1.xpose.msra.mxu0 0.0
        %974 = vmatprep.subr.mxu0 0.0
        %975 = vmatpush1.xpose.msra.mxu0 0.0
        %976 = vmatprep.subr.mxu0 0.0
        %977 = vmatpush1.xpose.msra.mxu0 0.0
        %978 = vmatprep.subr.mxu0 0.0
        %979 = vmatpush1.xpose.msra.mxu0 0.0
        %980 = vmatprep.subr.mxu0 0.0
        %981 = vmatpush1.xpose.msra.mxu0 0.0
        %982 = vmatprep.subr.mxu0 0.0
        %983 = vmatpush1.xpose.msra.mxu0 %v880
        %984 = vmatprep.subr.mxu0 0.0
        %985 = vmatpush2.xpose.msra.mxu0 0.0
        %986 = vmatprep.subr.mxu0 0.0
        %987 = vmatpush2.xpose.msra.mxu0 0.0
        %988 = vmatprep.subr.mxu0 0.0
        %989 = vmatpush2.xpose.msra.mxu0 0.0
        %990 = vmatprep.subr.mxu0 0.0
        %991 = vmatpush2.xpose.msra.mxu0 0.0
        %992 = vmatprep.subr.mxu0 0.0
        %993 = vmatpush2.xpose.msra.mxu0 0.0
        %994 = vmatprep.subr.mxu0 0.0
        %995 = vmatpush2.xpose.msra.mxu0 0.0
        %996 = vmatprep.subr.mxu0 0.0
        %997 = vmatpush2.xpose.msra.mxu0 0.0
        %998 = vmatprep.subr.mxu0 0.0
        %999 = vmatpush2.xpose.msra.mxu0 0.0
        %1000 = vmatprep.subr.mxu0 0.0
        %1001 = vmatpush2.xpose.msra.mxu0 0.0
        %1002 = vmatprep.subr.mxu0 0.0
        %1003 = vmatpush2.xpose.msra.mxu0 0.0
        %1004 = vmatprep.subr.mxu0 0.0
        %1005 = vmatpush2.xpose.msra.mxu0 0.0
        %1006 = vmatprep.subr.mxu0 0.0
        %1007 = vmatpush2.xpose.msra.mxu0 0.0
        %1008 = vmatprep.subr.mxu0 0.0
        %1009 = vmatpush2.xpose.msra.mxu0 0.0
        %1010 = vmatprep.subr.mxu0 0.0
        %1011 = vmatpush2.xpose.msra.mxu0 0.0
        %1012 = vmatprep.subr.mxu0 0.0
        %1013 = vmatpush2.xpose.msra.mxu0 0.0
        %1014 = vmatprep.subr.mxu0 0.0
        %1015 = vmatpush2.xpose.msra.mxu0 0.0
        %1016 = vmatprep.mubr.f32.mxu0 0.0
        %1017 = vmatmul.mubr.f32.gmra.mxu0 %v877
        %v1018 = vpop.f32.mrf.mxu0
        %v1019 = vadd.f32 %v949, %v1018
        %v1020 = vpop.f32.mrf.mxu0
        %1021 = vdwg.mxu0
        %1023 = vset.pattern.permute.xlu0 0
        %1024 = vperm.xlu0 %1023, %v282
        %v1025 = vpop.permute.xlu0 %1024
        %v1027 = vmul.f32 %v1019, %v1025
        %v1028 = vadd.f32 %v1027, %v283
        %vm1029 = vcmask 64512
        %v1030 = vsel %vm1029, %v1028, -inf
        %1031 = vmax.xlane.f32.xlu0 %v1030
        %v1032 = vpop.xlane.xlu0 %1031
        %v1033 = vsub.f32 %v1028, %v1032
        %v1034 = vmul.f32 %v1033, 1.442695
        %v1035 = vpow.pop %v1034
        %v1036 = vsel %vm1029, %v1035, 0.0
        %1037 = vadd.xlane.f32.xlu0 %v1036
        %v1038 = vpop.xlane.xlu0 %1037
        %v1039 = vrcp.pop %v1038
        %v1040 = vmul.f32 %v1035, %v1039
        %v1042 = vsel %vm1029, %v281, 0
        %1044 = vmatprep.subr.mxu0 0.0
        %1045 = vmatpush1.msra.mxu0 0.0
        %1046 = vmatprep.subr.mxu0 0.0
        %1047 = vmatpush1.msra.mxu0 0.0
        %1048 = vmatprep.subr.mxu0 0.0
        %1049 = vmatpush1.msra.mxu0 0.0
        %1050 = vmatprep.subr.mxu0 0.0
        %1051 = vmatpush1.msra.mxu0 0.0
        %1052 = vmatprep.subr.mxu0 0.0
        %1053 = vmatpush1.msra.mxu0 0.0
        %1054 = vmatprep.subr.mxu0 0.0
        %1055 = vmatpush1.msra.mxu0 0.0
        %1056 = vmatprep.subr.mxu0 0.0
        %1057 = vmatpush1.msra.mxu0 0.0
        %1058 = vmatprep.subr.mxu0 0.0
        %1059 = vmatpush1.msra.mxu0 0.0
        %1060 = vmatprep.subr.mxu0 0.0
        %1061 = vmatpush1.msra.mxu0 0.0
        %1062 = vmatprep.subr.mxu0 0.0
        %1063 = vmatpush1.msra.mxu0 0.0
        %1064 = vmatprep.subr.mxu0 0.0
        %1065 = vmatpush1.msra.mxu0 0.0
        %1066 = vmatprep.subr.mxu0 0.0
        %1067 = vmatpush1.msra.mxu0 0.0
        %1068 = vmatprep.subr.mxu0 0.0
        %1069 = vmatpush1.msra.mxu0 0.0
        %1070 = vmatprep.subr.mxu0 0.0
        %1071 = vmatpush1.msra.mxu0 0.0
        %1072 = vmatprep.subr.mxu0 0.0
        %1073 = vmatpush1.msra.mxu0 0.0
        %1074 = vmatprep.subr.mxu0 0.0
        %1075 = vmatpush1.msra.mxu0 %v1040
        %1076 = vmatprep.subr.mxu0 0.0
        %1077 = vmatpush2.msra.mxu0 0.0
        %1078 = vmatprep.subr.mxu0 0.0
        %1079 = vmatpush2.msra.mxu0 0.0
        %1080 = vmatprep.subr.mxu0 0.0
        %1081 = vmatpush2.msra.mxu0 0.0
        %1082 = vmatprep.subr.mxu0 0.0
        %1083 = vmatpush2.msra.mxu0 0.0
        %1084 = vmatprep.subr.mxu0 0.0
        %1085 = vmatpush2.msra.mxu0 0.0
        %1086 = vmatprep.subr.mxu0 0.0
        %1087 = vmatpush2.msra.mxu0 0.0
        %1088 = vmatprep.subr.mxu0 0.0
        %1089 = vmatpush2.msra.mxu0 0.0
        %1090 = vmatprep.subr.mxu0 0.0
        %1091 = vmatpush2.msra.mxu0 0.0
        %1092 = vmatprep.subr.mxu0 0.0
        %1093 = vmatpush2.msra.mxu0 0.0
        %1094 = vmatprep.subr.mxu0 0.0
        %1095 = vmatpush2.msra.mxu0 0.0
        %1096 = vmatprep.subr.mxu0 0.0
        %1097 = vmatpush2.msra.mxu0 0.0
        %1098 = vmatprep.subr.mxu0 0.0
        %1099 = vmatpush2.msra.mxu0 0.0
        %1100 = vmatprep.subr.mxu0 0.0
        %1101 = vmatpush2.msra.mxu0 0.0
        %1102 = vmatprep.subr.mxu0 0.0
        %1103 = vmatpush2.msra.mxu0 0.0
        %1104 = vmatprep.subr.mxu0 0.0
        %1105 = vmatpush2.msra.mxu0 0.0
        %1106 = vmatprep.subr.mxu0 0.0
        %1107 = vmatpush2.msra.mxu0 0.0
        %1108 = vmatprep.mubr.f32.mxu0 0.0
        %1109 = vmatmul.mubr.f32.gmra.mxu0 %v1042
        %v1110 = vpop.f32.mrf.mxu0
        %v1111 = vadd.f32 0.0, %v1110
        %v1112 = vpop.f32.mrf.mxu0
        %1113 = vdwg.mxu0
        %v1115 = vsel %vm1029, %v1111, 0
        %1117 = vmatprep.subr.mxu0 0.0
        %1118 = vmatpush1.msra.mxu0 0.0
        %1119 = vmatprep.subr.mxu0 0.0
        %1120 = vmatpush1.msra.mxu0 0.0
        %1121 = vmatprep.subr.mxu0 0.0
        %1122 = vmatpush1.msra.mxu0 0.0
        %1123 = vmatprep.subr.mxu0 0.0
        %1124 = vmatpush1.msra.mxu0 0.0
        %1125 = vmatprep.subr.mxu0 0.0
        %1126 = vmatpush1.msra.mxu0 0.0
        %1127 = vmatprep.subr.mxu0 0.0
        %1128 = vmatpush1.msra.mxu0 0.0
        %1129 = vmatprep.subr.mxu0 0.0
        %1130 = vmatpush1.msra.mxu0 0.0
        %1131 = vmatprep.subr.mxu0 0.0
        %1132 = vmatpush1.msra.mxu0 0.0
        %1133 = vmatprep.subr.mxu0 0.0
        %1134 = vmatpush1.msra.mxu0 0.0
        %1135 = vmatprep.subr.mxu0 0.0
        %1136 = vmatpush1.msra.mxu0 0.0
        %1137 = vmatprep.subr.mxu0 0.0
        %1138 = vmatpush1.msra.mxu0 0.0
        %1139 = vmatprep.subr.mxu0 0.0
        %1140 = vmatpush1.msra.mxu0 0.0
        %1141 = vmatprep.subr.mxu0 0.0
        %1142 = vmatpush1.msra.mxu0 0.0
        %1143 = vmatprep.subr.mxu0 0.0
        %1144 = vmatpush1.msra.mxu0 0.0
        %1145 = vmatprep.subr.mxu0 0.0
        %1146 = vmatpush1.msra.mxu0 0.0
        %1147 = vmatprep.subr.mxu0 %v633
        %1148 = vmatpush1.msra.mxu0 %v631
        %1149 = vmatprep.subr.mxu0 0.0
        %1150 = vmatpush2.msra.mxu0 0.0
        %1151 = vmatprep.subr.mxu0 0.0
        %1152 = vmatpush2.msra.mxu0 0.0
        %1153 = vmatprep.subr.mxu0 0.0
        %1154 = vmatpush2.msra.mxu0 0.0
        %1155 = vmatprep.subr.mxu0 0.0
        %1156 = vmatpush2.msra.mxu0 0.0
        %1157 = vmatprep.subr.mxu0 0.0
        %1158 = vmatpush2.msra.mxu0 0.0
        %1159 = vmatprep.subr.mxu0 0.0
        %1160 = vmatpush2.msra.mxu0 0.0
        %1161 = vmatprep.subr.mxu0 0.0
        %1162 = vmatpush2.msra.mxu0 0.0
        %1163 = vmatprep.subr.mxu0 0.0
        %1164 = vmatpush2.msra.mxu0 0.0
        %1165 = vmatprep.subr.mxu0 0.0
        %1166 = vmatpush2.msra.mxu0 0.0
        %1167 = vmatprep.subr.mxu0 0.0
        %1168 = vmatpush2.msra.mxu0 0.0
        %1169 = vmatprep.subr.mxu0 0.0
        %1170 = vmatpush2.msra.mxu0 0.0
        %1171 = vmatprep.subr.mxu0 0.0
        %1172 = vmatpush2.msra.mxu0 0.0
        %1173 = vmatprep.subr.mxu0 0.0
        %1174 = vmatpush2.msra.mxu0 0.0
        %1175 = vmatprep.subr.mxu0 0.0
        %1176 = vmatpush2.msra.mxu0 0.0
        %1177 = vmatprep.subr.mxu0 0.0
        %1178 = vmatpush2.msra.mxu0 0.0
        %1179 = vmatprep.subr.mxu0 0.0
        %1180 = vmatpush2.msra.mxu0 0.0
        %1181 = vmatprep.mubr.f32.mxu0 0.0
        %1182 = vmatmul.mubr.f32.gmra.mxu0 %v1115
        %v1183 = vpop.f32.mrf.mxu0
        %v1184 = vadd.f32 0.0, %v1183
        %v1185 = vpop.f32.mrf.mxu0
        %v1186 = vadd.f32 0.0, %v1185
        %1187 = vdwg.mxu0
        %1188 = vmatprep.subr.mxu0 0.0
        %1189 = vmatpush1.msra.mxu0 0.0
        %1190 = vmatprep.subr.mxu0 0.0
        %1191 = vmatpush1.msra.mxu0 0.0
        %1192 = vmatprep.subr.mxu0 0.0
        %1193 = vmatpush1.msra.mxu0 0.0
        %1194 = vmatprep.subr.mxu0 0.0
        %1195 = vmatpush1.msra.mxu0 0.0
        %1196 = vmatprep.subr.mxu0 0.0
        %1197 = vmatpush1.msra.mxu0 0.0
        %1198 = vmatprep.subr.mxu0 0.0
        %1199 = vmatpush1.msra.mxu0 0.0
        %1200 = vmatprep.subr.mxu0 0.0
        %1201 = vmatpush1.msra.mxu0 0.0
        %1202 = vmatprep.subr.mxu0 0.0
        %1203 = vmatpush1.msra.mxu0 0.0
        %1204 = vmatprep.subr.mxu0 0.0
        %1205 = vmatpush1.msra.mxu0 0.0
        %1206 = vmatprep.subr.mxu0 0.0
        %1207 = vmatpush1.msra.mxu0 0.0
        %1208 = vmatprep.subr.mxu0 0.0
        %1209 = vmatpush1.msra.mxu0 0.0
        %1210 = vmatprep.subr.mxu0 0.0
        %1211 = vmatpush1.msra.mxu0 0.0
        %1212 = vmatprep.subr.mxu0 0.0
        %1213 = vmatpush1.msra.mxu0 0.0
        %1214 = vmatprep.subr.mxu0 0.0
        %1215 = vmatpush1.msra.mxu0 0.0
        %1216 = vmatprep.subr.mxu0 0.0
        %1217 = vmatpush1.msra.mxu0 0.0
        %1218 = vmatprep.subr.mxu0 0.0
        %1219 = vmatpush1.msra.mxu0 %v673
        %1220 = vmatprep.subr.mxu0 0.0
        %1221 = vmatpush2.msra.mxu0 0.0
        %1222 = vmatprep.subr.mxu0 0.0
        %1223 = vmatpush2.msra.mxu0 0.0
        %1224 = vmatprep.subr.mxu0 0.0
        %1225 = vmatpush2.msra.mxu0 0.0
        %1226 = vmatprep.subr.mxu0 0.0
        %1227 = vmatpush2.msra.mxu0 0.0
        %1228 = vmatprep.subr.mxu0 0.0
        %1229 = vmatpush2.msra.mxu0 0.0
        %1230 = vmatprep.subr.mxu0 0.0
        %1231 = vmatpush2.msra.mxu0 0.0
        %1232 = vmatprep.subr.mxu0 0.0
        %1233 = vmatpush2.msra.mxu0 0.0
        %1234 = vmatprep.subr.mxu0 0.0
        %1235 = vmatpush2.msra.mxu0 0.0
        %1236 = vmatprep.subr.mxu0 0.0
        %1237 = vmatpush2.msra.mxu0 0.0
        %1238 = vmatprep.subr.mxu0 0.0
        %1239 = vmatpush2.msra.mxu0 0.0
        %1240 = vmatprep.subr.mxu0 0.0
        %1241 = vmatpush2.msra.mxu0 0.0
        %1242 = vmatprep.subr.mxu0 0.0
        %1243 = vmatpush2.msra.mxu0 0.0
        %1244 = vmatprep.subr.mxu0 0.0
        %1245 = vmatpush2.msra.mxu0 0.0
        %1246 = vmatprep.subr.mxu0 0.0
        %1247 = vmatpush2.msra.mxu0 0.0
        %1248 = vmatprep.subr.mxu0 0.0
        %1249 = vmatpush2.msra.mxu0 0.0
        %1250 = vmatprep.subr.mxu0 0.0
        %1251 = vmatpush2.msra.mxu0 0.0
        %1252 = vmatprep.mubr.f32.mxu0 0.0
        %1253 = vmatmul.mubr.f32.gmra.mxu0 %v1115
        %v1254 = vpop.f32.mrf.mxu0
        %v1255 = vadd.f32 0.0, %v1254
        %v1256 = vpop.f32.mrf.mxu0
        %1257 = vdwg.mxu0
        %v1261 = vcombine.low %v1184, %v1186
        %1262 = vrot.lane.b32.xlu0 %v1261, 19
        %v1263 = vpop.permute.xlu0 %1262
        %1264 = vrot.lane.b32.xlu0 %v1255, 19
        %v1265 = vpop.permute.xlu0 %1264
        %v1266 = vrot.slane %v1263, 4
        %vm1267 = vcmask 154624
        %v1268 = vsel %vm1267, %v1266, %v1263
        %v1269 = vsel %vm1267, %v1266, %v1265
        %v1272 = vadd.f32 %v285, %v1268
        %v1273 = vadd.f32 %v286, %v1269
        %v1277 = vunpack.c.l.s4 1983009808
        %v1278 = vunpack.c.0.s8 %v1277
        %v1279 = vlaneseq
        %v1280 = vshrl.u32 %v1279, 7
        %v1281 = vsub.s32 %v1278, %v1280
        %v1282 = vrot.slane %v1272, %v1281
        %v1284 = vunpack.c.l.s4 1983009808
        %v1285 = vunpack.c.0.s8 %v1284
        %v1286 = vlaneseq
        %v1287 = vshrl.u32 %v1286, 7
        %v1288 = vsub.s32 %v1285, %v1287
        %v1289 = vrot.slane %v1273, %v1288
        %v1290 = vcombine.low %v1282, %v1289
        %1291 = vrot.lane.b32.xlu0 %v1290, 109
        %v1292 = vpop.permute.xlu0 %1291
        %v1293 = vrot.slane %v1292, 2
        %v1294 = vsel %vm502, %v1292, %v1293
        %vm1296 = vcmask 1043458
        %vm1297 = vmor %vm1296, %vm400
        %vm1298 = vcmask 553988
        %vm1299 = vmor %vm1298, %vm1297
        %1300 = vst.msk [vmem:[%s271] sm:$0x3f] %vm1299, %v1294
        %s1301 = sand.u32 %s181, 1
        %s1302 = scalar_lea.sflag [#allocation3], %s1301
        %s1303 = sand.u32 %s181, 1
        %s1304 = smul.addr %s1303, 6
        %s1305 = scalar_lea.vmem [#allocation2], %s1304
        // Predicated region
        $region49: #{tpu_custom_call.1} parent=47 // pred_check
          %p1306 = pneg %p191
        $region50: #{tpu_custom_call.1} parent=47 // pred_check_branch
          %1308 = sbr.rel (%p1306) target = $region52
        $region51: #{tpu_custom_call.1} parent=47 // pred_region
          %s1310 = ssub.s32 96, 96
          %1311 = vsyncadd %s1302, %s1310
          %s1312 = smul.addr %s21, 3
          %s1313 = smul.addr %s1312, 32
          %s1314 = scalar_lea.hbm %s7, %s1313
          %s1316 = sshll.u32 %s1305, 4
          %s1317 = int_to_ptr.vmem [resolvable:$true] %s1316
          %1319 = dma.vmem_to_hbm [thread:$0]  %s1317, 96, %s1314, %s1302
        $region52: #{tpu_custom_call.1} parent=47 // pred_fallthru
          _
      $region48: #{tpu_custom_call.1} parent=5 // pred_fallthru
        _
      %p1320 = scmp.le.s32.totalorder 2, %s16
      // Predicated region
      $region53: #{tpu_custom_call.1} parent=5 // pred_check
        %p1321 = pneg %p1320
      $region54: #{tpu_custom_call.1} parent=5 // pred_check_branch
        %1323 = sbr.rel (%p1321) target = $region56
      $region55: #{tpu_custom_call.1} parent=5 // pred_region
        %s1324 = ssub.s32 %s16, 2
        // Predicated region
        $region57: #{tpu_custom_call.1} parent=55 // pred_check
          %p1325 = pneg %p197
        $region58: #{tpu_custom_call.1} parent=55 // pred_check_branch
          %1327 = sbr.rel (%p1325) target = $region60
        $region59: #{tpu_custom_call.1} parent=55 // pred_region
          %s1328 = sand.u32 %s182, 1
          %s1329 = scalar_lea.sflag [#allocation3], %s1328
          %s1330 = sand.u32 %s182, 1
          %s1331 = smul.addr %s1330, 6
          %s1332 = scalar_lea.vmem [#allocation2], %s1331
          %1333 = dma.done %s1329, 96
        $region60: #{tpu_custom_call.1} parent=55 // pred_fallthru
          _
      $region56: #{tpu_custom_call.1} parent=5 // pred_fallthru
        _
    $region6: #{tpu_custom_call.1} parent=1 // loop_footer
      %s20 = sadd.s32 1, %s16
    $region7: #{tpu_custom_call.1} parent=1 // loop_footer_branch
      %15 = sbr.rel target = $region3
    $region8: #{tpu_custom_call.1} parent=1 // loop_exit
      _
    %1334 = vsyncpa [#allocation3], 1
    %s1335 = scalar_lea.sflag [#allocation3], 1
    %1336 = vsyncpa %s1335, 1

</llo_original>
